<compile_context>
chip_gen: v6e
topology: v6e:2x2x1
jax: 0.10.0
libtpu: 0.0.40
codegen_flags: <defaults>
</compile_context>

<pallas_src>
import jax
import jax.numpy as jnp
from jax.experimental import pallas as pl
from jax.experimental.pallas import tpu as pltpu


def _cha_kernel(q_ref, hist_ref, waq_ref, wah_ref, ba_ref, vt_ref,
                e_ref, alpha_ref):
    # q_ref:     (R, 2H)       R = TT*B rows of concat([h_tilde, c_t]), (t,b)-major
    # hist_ref:  (R*D, H)      history rows, (t, b, d)-major
    # waq_ref:   (2H, H)       pre-transposed (in, out)
    # wah_ref:   (H, H)        pre-transposed (in, out)
    # ba_ref:    (1, H)
    # vt_ref:    (1, H)
    # e_ref:     (R, H)        attended history vectors
    # alpha_ref: (1, 1, R*D)   lane-dense flat attention weights
    q = q_ref[...]                               # (R, 2H)
    hist = hist_ref[...]                         # (R*D, H)
    R = q.shape[0]
    H = wah_ref.shape[0]
    D = hist.shape[0] // R

    # q path: ONE fused matmul with K = 2H (concat done once in the wrapper),
    # ba folded in on the small (R, H) tile before the D-broadcast.
    q_proj = jnp.dot(q, waq_ref[...],
                     preferred_element_type=jnp.float32) + ba_ref[...]   # (R, H)

    # history path: one big (R*D, H) @ (H, H) MXU matmul per grid step.
    hist_proj = jnp.dot(hist, wah_ref[...],
                        preferred_element_type=jnp.float32)              # (R*D, H)

    # Reshape each tensor exactly once; with D == 8 this is layout-preserving.
    hist_3d = hist.reshape(R, D, H)                                       # reused below
    score = jnp.tanh(hist_proj.reshape(R, D, H) + q_proj[:, None, :])     # (R, D, H)

    # alpha_unscaled = einsum('rdh,h->rd', score, v_t)
    alpha_us = jnp.sum(score * vt_ref[...], axis=-1)                      # (R, D)

    # softmax over the history dimension D (exact, f32).
    m = jnp.max(alpha_us, axis=-1, keepdims=True)
    ex = jnp.exp(alpha_us - m)
    alpha = ex / jnp.sum(ex, axis=-1, keepdims=True)                      # (R, D)

    # e_t = sum_d alpha[:, d, None] * hist[:, d, :]
    e_t = jnp.sum(alpha[:, :, None] * hist_3d, axis=1)                    # (R, H)

    e_ref[...] = e_t.astype(e_ref.dtype)
    alpha_ref[...] = alpha.reshape(1, 1, R * D).astype(alpha_ref.dtype)


def prepare_params(waq, wah, ba, v_t):
    """One-time parameter prep (run at init, NOT per step).

    waq: (H, 2H) torch-style Linear weight; wah: (H, H); ba, v_t: (H,).
    Returns weights pre-transposed to (in, out) layout: Waq stays fused
    (the kernel consumes a pre-concatenated [h_tilde, c_t] query).
    """
    H = wah.shape[0]
    waq_t = waq.T                  # (2H, H)
    wah_t = wah.T                  # (H, H)
    return waq_t, wah_t, ba.reshape(1, H), v_t.reshape(1, H)


def current_historical_attention_batched(h_tilde_seq, c_t_seq, hist_seq, params,
                                          *, block_t=None):
    """Forward of CurrentHistoricalAttention for T independent steps.

    h_tilde_seq, c_t_seq: (T, B, H); hist_seq: (T, B, D, H);
    params from prepare_params().  Returns (e (T,B,H), alpha (T,B,D)).
    """
    waq_t, wah_t, ba2, vt2 = params
    T, B, H = h_tilde_seq.shape
    D = hist_seq.shape[2]

    if block_t is None:
        # Even grid (>=2) so both v7x TensorCores get work; at T=16 this gives
        # TT*B*D = 128 MXU rows per step (raise TT toward 256 rows on v6e/v7x
        # at production T, keeping the v7x 64 MiB VMEM cap in mind).
        block_t = T // 2 if T % 2 == 0 else T
    assert T % block_t == 0, "block_t must divide T"
    G = T // block_t           # grid size
    R = block_t * B            # query / e rows per block

    # One-time wrapper-side layout work (outside the grid loop):
    #   fused query slab and flat (t,b,d)-major history slab.
    q_cat = jnp.concatenate([h_tilde_seq, c_t_seq], axis=-1).reshape(T * B, 2 * H)
    hist_flat = hist_seq.reshape(T * B * D, H)

    grid_spec = pltpu.PrefetchScalarGridSpec(
        num_scalar_prefetch=0,
        grid=(G,),
        in_specs=[
            pl.BlockSpec((R, 2 * H), lambda g: (g, 0)),       # fused query slab
            pl.BlockSpec((R * D, H), lambda g: (g, 0)),       # history slab
            # Constant operands: index_map never changes.  At H=32 the extra
            # pipeline buffer is negligible; at production H use
            # pipeline_mode=pl.Buffered(1) (or resident VMEM scratch).
            pl.BlockSpec((2 * H, H), lambda g: (0, 0)),       # Waq (fused, transposed)
            pl.BlockSpec((H, H), lambda g: (0, 0)),           # Wah (transposed)
            pl.BlockSpec((1, H), lambda g: (0, 0)),           # ba
            pl.BlockSpec((1, H), lambda g: (0, 0)),           # v_t
        ],
        out_specs=[
            pl.BlockSpec((R, H), lambda g: (g, 0)),           # e_t rows
            pl.BlockSpec((1, 1, R * D), lambda g: (g, 0, 0)), # lane-dense alpha
        ],
    )
    e_flat, alpha_flat = pl.pallas_call(
        _cha_kernel,
        out_shape=(
            jax.ShapeDtypeStruct((T * B, H), h_tilde_seq.dtype),
            jax.ShapeDtypeStruct((G, 1, R * D), h_tilde_seq.dtype),
        ),
        grid_spec=grid_spec,
        compiler_params=pltpu.CompilerParams(
            dimension_semantics=("parallel",)),               # shards grid over TCs on v7x
    )(q_cat, hist_flat, waq_t, wah_t, ba2, vt2)

    # Free (contiguous) un-flattens: rows/lanes were laid out (t, b, d)-major.
    return e_flat.reshape(T, B, H), alpha_flat.reshape(T, B, D)


def current_historical_attention(h_tilde, c_t, h_history, params):
    """Single-step convenience wrapper (module-API parity).  Prefer the
    batched entry point in recurrent loops to avoid per-step stacking."""
    hist = jnp.stack(h_history, axis=1)                      # (B, D, H)
    e, a = current_historical_attention_batched(
        h_tilde[None], c_t[None], hist[None], params, block_t=1)
    return e[0], a[0]


def _reference_batched(ht, ct, hist, waq, wah, ba, v_t):
    # ht, ct: (T,B,H); hist: (T,B,D,H); weights in torch Linear layout.
    q = jnp.concatenate([ht, ct], axis=-1)                   # (T,B,2H)
    q_proj = jnp.einsum('tbi,oi->tbo', q, waq)
    h_proj = jnp.einsum('tbdi,oi->tbdo', hist, wah)
    score = jnp.tanh(q_proj[:, :, None, :] + h_proj + ba)
    au = jnp.einsum('tbdh,h->tbd', score, v_t)
    alpha = jax.nn.softmax(au, axis=-1)
    e = jnp.einsum('tbd,tbdh->tbh', alpha, hist)
    return e, alpha


if __name__ == "__main__":
    B, H, D, T = 2, 32, 8, 16   # batch, hidden_dim, history length, timesteps

    key = jax.random.PRNGKey(0)
    k1, k2, k3, k4, k5, k6 = jax.random.split(key, 6)

    # Parameters (shapes per the nn.Module __init__).
    waq = jax.random.normal(k1, (H, 2 * H), jnp.float32) * 0.1   # Linear(2H -> H), no bias
    wah = jax.random.normal(k2, (H, H), jnp.float32) * 0.1        # Linear(H -> H), no bias
    ba = jnp.zeros((H,), jnp.float32)                             # Parameter zeros(H)
    v_t = jax.random.normal(k3, (H,), jnp.float32)                # Parameter randn(H)

    # Inputs: T independent steps.
    h_tilde_seq = jax.random.normal(k4, (T, B, H), jnp.float32)
    c_t_seq = jax.random.normal(k5, (T, B, H), jnp.float32)
    hist_seq = jax.random.normal(k6, (T, B, D, H), jnp.float32)

    # One-time init work (outside the hot path).
    params = prepare_params(waq, wah, ba, v_t)

    fwd = jax.jit(current_historical_attention_batched)
    e_seq, alpha_seq = fwd(h_tilde_seq, c_t_seq, hist_seq, params)
    jax.block_until_ready((e_seq, alpha_seq))

    e_ref, a_ref = _reference_batched(h_tilde_seq, c_t_seq, hist_seq,
                                      waq, wah, ba, v_t)
    assert e_seq.shape == (T, B, H) and alpha_seq.shape == (T, B, D)
    assert jnp.allclose(e_seq, e_ref, atol=1e-5, rtol=1e-4)
    assert jnp.allclose(alpha_seq, a_ref, atol=1e-5, rtol=1e-4)

    # Single-step path matches the module API too.
    e1, a1 = current_historical_attention(
        h_tilde_seq[0], c_t_seq[0], [hist_seq[0, :, d, :] for d in range(D)], params)
    jax.block_until_ready((e1, a1))
    assert jnp.allclose(e1, e_ref[0], atol=1e-5, rtol=1e-4)
    assert jnp.allclose(a1, a_ref[0], atol=1e-5, rtol=1e-4)

    print("KERNEL_OK")
</pallas_src>

<mosaic_0001>
module attributes {stable_mosaic.version = 11 : i64} {
  func.func @_cha_kernel(%arg0: i32, %arg1: memref<16x64xf32, #tpu.memory_space<vmem>>, %arg2: memref<128x32xf32, #tpu.memory_space<vmem>>, %arg3: memref<64x32xf32, #tpu.memory_space<vmem>>, %arg4: memref<32x32xf32, #tpu.memory_space<vmem>>, %arg5: memref<1x32xf32, #tpu.memory_space<vmem>>, %arg6: memref<1x32xf32, #tpu.memory_space<vmem>>, %arg7: memref<16x32xf32, #tpu.memory_space<vmem>>, %arg8: memref<1x1x128xf32, #tpu.memory_space<vmem>>) attributes {dimension_semantics = [#tpu.dimension_semantics<parallel>], iteration_bounds = array<i64: 2>, scalar_prefetch = 0 : i64, scratch_operands = 0 : i64, tpu.core_type = #tpu.core_type<tc>, window_params = [{transform_indices = @transform_0, window_bounds = array<i64: 16, 64>}, {transform_indices = @transform_1, window_bounds = array<i64: 128, 32>}, {pipeline_mode = #tpu.pipeline_mode<synchronous>, transform_indices = @transform_2, window_bounds = array<i64: 64, 32>}, {pipeline_mode = #tpu.pipeline_mode<synchronous>, transform_indices = @transform_3, window_bounds = array<i64: 32, 32>}, {pipeline_mode = #tpu.pipeline_mode<synchronous>, transform_indices = @transform_4, window_bounds = array<i64: 1, 32>}, {pipeline_mode = #tpu.pipeline_mode<synchronous>, transform_indices = @transform_5, window_bounds = array<i64: 1, 32>}, {transform_indices = @transform_6, window_bounds = array<i64: 16, 32>}, {transform_indices = @transform_7, window_bounds = array<i64: 1, 1, 128>}]} {
    %c0 = arith.constant 0 : index
    %c0_0 = arith.constant 0 : index
    %0 = vector.load %arg1[%c0, %c0_0] : memref<16x64xf32, #tpu.memory_space<vmem>>, vector<16x64xf32>
    %c0_1 = arith.constant 0 : index
    %c0_2 = arith.constant 0 : index
    %1 = vector.load %arg2[%c0_1, %c0_2] : memref<128x32xf32, #tpu.memory_space<vmem>>, vector<128x32xf32>
    %c0_3 = arith.constant 0 : index
    %c0_4 = arith.constant 0 : index
    %2 = vector.load %arg3[%c0_3, %c0_4] : memref<64x32xf32, #tpu.memory_space<vmem>>, vector<64x32xf32>
    %cst = arith.constant dense<0.000000e+00> : vector<16x32xf32>
    %3 = tpu.matmul %0, %2, %cst {dimension_numbers = #tpu.dot_dimension_numbers<[1], [0], [0], [1], [0, 0, 1, 1], [], []>} : vector<16x64xf32>, vector<64x32xf32>, vector<16x32xf32> -> vector<16x32xf32>
    %c0_5 = arith.constant 0 : index
    %c0_6 = arith.constant 0 : index
    %4 = vector.load %arg5[%c0_5, %c0_6] : memref<1x32xf32, #tpu.memory_space<vmem>>, vector<1x32xf32>
    %5 = vector.broadcast %4 : vector<1x32xf32> to vector<16x32xf32>
    %6 = arith.addf %3, %5 : vector<16x32xf32>
    %c0_7 = arith.constant 0 : index
    %c0_8 = arith.constant 0 : index
    %7 = vector.load %arg4[%c0_7, %c0_8] : memref<32x32xf32, #tpu.memory_space<vmem>>, vector<32x32xf32>
    %cst_9 = arith.constant dense<0.000000e+00> : vector<128x32xf32>
    %8 = tpu.matmul %1, %7, %cst_9 {dimension_numbers = #tpu.dot_dimension_numbers<[1], [0], [0], [1], [0, 0, 1, 1], [], []>} : vector<128x32xf32>, vector<32x32xf32>, vector<128x32xf32> -> vector<128x32xf32>
    %9 = vector.shape_cast %1 : vector<128x32xf32> to vector<16x8x32xf32>
    %10 = vector.shape_cast %8 : vector<128x32xf32> to vector<16x8x32xf32>
    %11 = vector.shape_cast %6 : vector<16x32xf32> to vector<16x1x32xf32>
    %12 = vector.broadcast %11 : vector<16x1x32xf32> to vector<16x8x32xf32>
    %13 = arith.addf %10, %12 : vector<16x8x32xf32>
    %14 = math.tanh %13 : vector<16x8x32xf32>
    %c0_10 = arith.constant 0 : index
    %c0_11 = arith.constant 0 : index
    %15 = vector.load %arg6[%c0_10, %c0_11] : memref<1x32xf32, #tpu.memory_space<vmem>>, vector<1x32xf32>
    %16 = vector.shape_cast %15 : vector<1x32xf32> to vector<1x1x32xf32>
    %17 = vector.broadcast %16 : vector<1x1x32xf32> to vector<16x8x32xf32>
    %18 = arith.mulf %14, %17 : vector<16x8x32xf32>
    %cst_12 = arith.constant dense<0.000000e+00> : vector<16x8xf32>
    %19 = vector.multi_reduction <add>, %18, %cst_12 [2] : vector<16x8x32xf32> to vector<16x8xf32>
    %cst_13 = arith.constant dense<0xFF800000> : vector<16xf32>
    %20 = vector.multi_reduction <maximumf>, %19, %cst_13 [1] : vector<16x8xf32> to vector<16xf32>
    %21 = vector.shape_cast %20 : vector<16xf32> to vector<16x1xf32>
    %22 = vector.broadcast %21 : vector<16x1xf32> to vector<16x8xf32>
    %23 = arith.subf %19, %22 : vector<16x8xf32>
    %24 = math.exp %23 : vector<16x8xf32>
    %cst_14 = arith.constant dense<0.000000e+00> : vector<16xf32>
    %25 = vector.multi_reduction <add>, %24, %cst_14 [1] : vector<16x8xf32> to vector<16xf32>
    %26 = vector.shape_cast %25 : vector<16xf32> to vector<16x1xf32>
    %27 = vector.broadcast %26 : vector<16x1xf32> to vector<16x8xf32>
    %28 = arith.divf %24, %27 : vector<16x8xf32>
    %29 = vector.shape_cast %28 : vector<16x8xf32> to vector<16x8x1xf32>
    %30 = vector.broadcast %29 : vector<16x8x1xf32> to vector<16x8x32xf32>
    %31 = arith.mulf %30, %9 : vector<16x8x32xf32>
    %cst_15 = arith.constant dense<0.000000e+00> : vector<16x32xf32>
    %32 = vector.multi_reduction <add>, %31, %cst_15 [1] : vector<16x8x32xf32> to vector<16x32xf32>
    %c0_16 = arith.constant 0 : index
    %c0_17 = arith.constant 0 : index
    %33 = vector.load %arg7[%c0_16, %c0_17] : memref<16x32xf32, #tpu.memory_space<vmem>>, vector<16x32xf32>
    tpu.vector_store %arg7[%c0_16, %c0_17], %32 {strides = array<i32>} : memref<16x32xf32, #tpu.memory_space<vmem>>, vector<16x32xf32>,
    %34 = vector.shape_cast %28 : vector<16x8xf32> to vector<1x1x128xf32>
    %c0_18 = arith.constant 0 : index
    %c0_19 = arith.constant 0 : index
    %c0_20 = arith.constant 0 : index
    %35 = vector.load %arg8[%c0_18, %c0_19, %c0_20] : memref<1x1x128xf32, #tpu.memory_space<vmem>>, vector<1x1x128xf32>
    tpu.vector_store %arg8[%c0_18, %c0_19, %c0_20], %34 {strides = array<i32>} : memref<1x1x128xf32, #tpu.memory_space<vmem>>, vector<1x1x128xf32>,
    return
  }
  func.func @transform_0(%arg0: i32) -> (i32, i32) {
    %c0_i32 = arith.constant 0 : i32
    %c0_i32_0 = arith.constant 0 : i32
    return %arg0, %c0_i32 : i32, i32
  }
  func.func @transform_1(%arg0: i32) -> (i32, i32) {
    %c0_i32 = arith.constant 0 : i32
    %c0_i32_0 = arith.constant 0 : i32
    return %arg0, %c0_i32 : i32, i32
  }
  func.func @transform_2(%arg0: i32) -> (i32, i32) {
    %c0_i32 = arith.constant 0 : i32
    %c0_i32_0 = arith.constant 0 : i32
    %c0_i32_1 = arith.constant 0 : i32
    return %c0_i32, %c0_i32_0 : i32, i32
  }
  func.func @transform_3(%arg0: i32) -> (i32, i32) {
    %c0_i32 = arith.constant 0 : i32
    %c0_i32_0 = arith.constant 0 : i32
    %c0_i32_1 = arith.constant 0 : i32
    return %c0_i32, %c0_i32_0 : i32, i32
  }
  func.func @transform_4(%arg0: i32) -> (i32, i32) {
    %c0_i32 = arith.constant 0 : i32
    %c0_i32_0 = arith.constant 0 : i32
    %c0_i32_1 = arith.constant 0 : i32
    return %c0_i32, %c0_i32_0 : i32, i32
  }
  func.func @transform_5(%arg0: i32) -> (i32, i32) {
    %c0_i32 = arith.constant 0 : i32
    %c0_i32_0 = arith.constant 0 : i32
    %c0_i32_1 = arith.constant 0 : i32
    return %c0_i32, %c0_i32_0 : i32, i32
  }
  func.func @transform_6(%arg0: i32) -> (i32, i32) {
    %c0_i32 = arith.constant 0 : i32
    %c0_i32_0 = arith.constant 0 : i32
    return %arg0, %c0_i32 : i32, i32
  }
  func.func @transform_7(%arg0: i32) -> (i32, i32, i32) {
    %c0_i32 = arith.constant 0 : i32
    %c0_i32_0 = arith.constant 0 : i32
    %c0_i32_1 = arith.constant 0 : i32
    return %arg0, %c0_i32, %c0_i32_0 : i32, i32, i32
  }
}

</mosaic_0001>

<llo_original>
// kernel: current_historical_attention_batched.1
$region0: #{current_historical_attention_batched.1}
  #allocation0 [shape = 'u32[]', space=smem, size = 0x4, offset = 0x4, fixed_abs, tag = 'smem constant byte address 0x4 - core index']
  #allocation1 [shape = 'u32[144,128]{1,0:T(1,128)}', space=vmem, size = 0x12000, scoped, tag = 'internal scratch']
  %s0 = inlined_call_operand.vmem [shape: f32[32,64], index: 0, kind: input, shape index: {}]
  %s1 = inlined_call_operand.hbm [shape: f32[256,32], index: 1, kind: input, shape index: {}]
  %s2 = inlined_call_operand.vmem [shape: f32[64,32], index: 2, kind: input, shape index: {}]
  %s3 = inlined_call_operand.vmem [shape: f32[32,32], index: 3, kind: input, shape index: {}]
  %s4 = inlined_call_operand.vmem [shape: f32[1,32], index: 4, kind: input, shape index: {}]
  %s5 = inlined_call_operand.vmem [shape: f32[1,32], index: 5, kind: input, shape index: {}]
  %s6 = inlined_call_operand.hbm [shape: f32[32,32], index: 6, kind: output, shape index: {0}]
  %s7 = inlined_call_operand.vmem [shape: f32[2,1,128], index: 7, kind: output, shape index: {1}]
  %8 = xla_tuple %s6, %s7
  %s9 = sld [smem:[#allocation0]]
  $region69: #{current_historical_attention_batched.1} parent=0
    _
  %s11 = ssub.s32 1, %s9
  %s12 = scalar_select 0, %s11, %s9
  $region1: #{current_historical_attention_batched.1} parent=0
    #allocation2 [shape = 'u8[131072]{0}', space=vmem, size = 0x20000, scoped, tag = 'input window, operand 1']
    #allocation3 [shape = 's32[2]{0}', space=sflag, size = 0x8, scoped, tag = 'scoped memory for current_historical_attention_batched.1']
    #allocation4 [shape = 's32[2]{0}', space=sflag, size = 0x8, scoped, tag = 'scoped memory for current_historical_attention_batched.1']
    #allocation5 [shape = 'u8[16384]{0}', space=vmem, size = 0x4000, scoped, tag = 'output window, operand 0']
    %13 = vsyncpa [#allocation3], 0
    %s14 = scalar_lea.sflag [#allocation3], 1
    %15 = vsyncpa %s14, 0
    %16 = vsyncpa [#allocation4], 0
    %s17 = scalar_lea.sflag [#allocation4], 1
    %18 = vsyncpa %s17, 0
    loop: start=0, step=1, limit=4
    $region2: #{current_historical_attention_batched.1} parent=1 // loop_pre_header
      _
    $region3: #{current_historical_attention_batched.1} parent=1 // loop_header
      %s20 = sphi 0, %s24
      %p21 = scmp.ge.s32.totalorder %s20, 4
      %s30 = sphi 0, %s32
      %s33 = sphi 0, %s30
      %s34 = sphi 0, %s33
      %s50 = sphi 0, %s34
      %s56 = sphi 0, %s58
      %s59 = sphi 0, %s56
      %s60 = sphi 0, %s59
      %s76 = sphi 0, %s60
      %s80 = sphi 0, %s80
      %s82 = sphi 0, %s80
      %s83 = sphi 0, %s82
      %s97 = sphi 0, %s83
      %s101 = sphi 0, %s101
      %s103 = sphi 0, %s101
      %s104 = sphi 0, %s103
      %s118 = sphi 0, %s104
      %s122 = sphi 0, %s122
      %s124 = sphi 0, %s122
      %s125 = sphi 0, %s124
      %s139 = sphi 0, %s125
      %s143 = sphi 0, %s143
      %s145 = sphi 0, %s143
      %s146 = sphi 0, %s145
      %s160 = sphi 0, %s146
      %s166 = sphi 0, %s168
      %s169 = sphi 0, %s166
      %s170 = sphi 0, %s169
      %s186 = sphi 0, %s170
      %s192 = sphi 0, %s194
      %s195 = sphi 0, %s192
      %s196 = sphi 0, %s195
      %s212 = sphi 0, %s196
    $region4: #{current_historical_attention_batched.1} parent=1 // loop_header_branch
      %23 = sbr.rel (%p21) target = $region8
    $region5: #{current_historical_attention_batched.1} parent=1 // loop_body
      %s25 = ssub.s32 %s20, 1
      %s26 = ssub.s32 %s20, 2
      %s27 = sadd.s32 %s20, 1
      %s28 = ssub.s32 %s20, %s27
      %p29 = scmp.eq.s32.totalorder %s28, 0
      %s31 = sadd.s32 %s30, 1
      %s32 = scalar_select %p29, %s30, %s31
      %p35 = pneg %p29
      %p36 = scmp.eq.s32.totalorder %s20, 1
      %p37 = por %p35, %p36
      %p38 = scmp.ne.s32.totalorder %s30, %s33
      %p39 = scmp.eq.s32.totalorder %s20, 0
      %p40 = por %p38, %p39
      %p41 = scmp.ne.s32.totalorder %s30, %s33
      %p42 = scmp.eq.s32.totalorder %s25, 1
      %p43 = por %p41, %p42
      %p44 = scmp.ne.s32.totalorder %s33, %s34
      %p45 = scmp.eq.s32.totalorder %s25, 0
      %p46 = por %p44, %p45
      %p47 = scmp.ne.s32.totalorder %s33, %s34
      %p48 = scmp.eq.s32.totalorder %s26, 1
      %p49 = por %p47, %p48
      %p51 = scmp.ne.s32.totalorder %s34, %s50
      %p52 = scmp.eq.s32.totalorder %s26, 0
      %p53 = por %p51, %p52
      %s54 = ssub.s32 %s20, %s27
      %p55 = scmp.eq.s32.totalorder %s54, 0
      %s57 = sadd.s32 %s56, 1
      %s58 = scalar_select %p55, %s56, %s57
      %p61 = pneg %p55
      %p62 = scmp.eq.s32.totalorder %s20, 1
      %p63 = por %p61, %p62
      %p64 = scmp.ne.s32.totalorder %s56, %s59
      %p65 = scmp.eq.s32.totalorder %s20, 0
      %p66 = por %p64, %p65
      %p67 = scmp.ne.s32.totalorder %s56, %s59
      %p68 = scmp.eq.s32.totalorder %s25, 1
      %p69 = por %p67, %p68
      %p70 = scmp.ne.s32.totalorder %s59, %s60
      %p71 = scmp.eq.s32.totalorder %s25, 0
      %p72 = por %p70, %p71
      %p73 = scmp.ne.s32.totalorder %s59, %s60
      %p74 = scmp.eq.s32.totalorder %s26, 1
      %p75 = por %p73, %p74
      %p77 = scmp.ne.s32.totalorder %s60, %s76
      %p78 = scmp.eq.s32.totalorder %s26, 0
      %p79 = por %p77, %p78
      %s81 = sadd.s32 %s80, 1
      %p84 = scmp.eq.s32.totalorder %s20, 1
      %p85 = scmp.ne.s32.totalorder %s80, %s82
      %p86 = scmp.eq.s32.totalorder %s20, 0
      %p87 = por %p85, %p86
      %p88 = scmp.ne.s32.totalorder %s80, %s82
      %p89 = scmp.eq.s32.totalorder %s25, 1
      %p90 = por %p88, %p89
      %p91 = scmp.ne.s32.totalorder %s82, %s83
      %p92 = scmp.eq.s32.totalorder %s25, 0
      %p93 = por %p91, %p92
      %p94 = scmp.ne.s32.totalorder %s82, %s83
      %p95 = scmp.eq.s32.totalorder %s26, 1
      %p96 = por %p94, %p95
      %p98 = scmp.ne.s32.totalorder %s83, %s97
      %p99 = scmp.eq.s32.totalorder %s26, 0
      %p100 = por %p98, %p99
      %s102 = sadd.s32 %s101, 1
      %p105 = scmp.eq.s32.totalorder %s20, 1
      %p106 = scmp.ne.s32.totalorder %s101, %s103
      %p107 = scmp.eq.s32.totalorder %s20, 0
      %p108 = por %p106, %p107
      %p109 = scmp.ne.s32.totalorder %s101, %s103
      %p110 = scmp.eq.s32.totalorder %s25, 1
      %p111 = por %p109, %p110
      %p112 = scmp.ne.s32.totalorder %s103, %s104
      %p113 = scmp.eq.s32.totalorder %s25, 0
      %p114 = por %p112, %p113
      %p115 = scmp.ne.s32.totalorder %s103, %s104
      %p116 = scmp.eq.s32.totalorder %s26, 1
      %p117 = por %p115, %p116
      %p119 = scmp.ne.s32.totalorder %s104, %s118
      %p120 = scmp.eq.s32.totalorder %s26, 0
      %p121 = por %p119, %p120
      %s123 = sadd.s32 %s122, 1
      %p126 = scmp.eq.s32.totalorder %s20, 1
      %p127 = scmp.ne.s32.totalorder %s122, %s124
      %p128 = scmp.eq.s32.totalorder %s20, 0
      %p129 = por %p127, %p128
      %p130 = scmp.ne.s32.totalorder %s122, %s124
      %p131 = scmp.eq.s32.totalorder %s25, 1
      %p132 = por %p130, %p131
      %p133 = scmp.ne.s32.totalorder %s124, %s125
      %p134 = scmp.eq.s32.totalorder %s25, 0
      %p135 = por %p133, %p134
      %p136 = scmp.ne.s32.totalorder %s124, %s125
      %p137 = scmp.eq.s32.totalorder %s26, 1
      %p138 = por %p136, %p137
      %p140 = scmp.ne.s32.totalorder %s125, %s139
      %p141 = scmp.eq.s32.totalorder %s26, 0
      %p142 = por %p140, %p141
      %s144 = sadd.s32 %s143, 1
      %p147 = scmp.eq.s32.totalorder %s20, 1
      %p148 = scmp.ne.s32.totalorder %s143, %s145
      %p149 = scmp.eq.s32.totalorder %s20, 0
      %p150 = por %p148, %p149
      %p151 = scmp.ne.s32.totalorder %s143, %s145
      %p152 = scmp.eq.s32.totalorder %s25, 1
      %p153 = por %p151, %p152
      %p154 = scmp.ne.s32.totalorder %s145, %s146
      %p155 = scmp.eq.s32.totalorder %s25, 0
      %p156 = por %p154, %p155
      %p157 = scmp.ne.s32.totalorder %s145, %s146
      %p158 = scmp.eq.s32.totalorder %s26, 1
      %p159 = por %p157, %p158
      %p161 = scmp.ne.s32.totalorder %s146, %s160
      %p162 = scmp.eq.s32.totalorder %s26, 0
      %p163 = por %p161, %p162
      %s164 = ssub.s32 %s20, %s27
      %p165 = scmp.eq.s32.totalorder %s164, 0
      %s167 = sadd.s32 %s166, 1
      %s168 = scalar_select %p165, %s166, %s167
      %p171 = pneg %p165
      %p172 = scmp.eq.s32.totalorder %s20, 1
      %p173 = por %p171, %p172
      %p174 = scmp.ne.s32.totalorder %s166, %s169
      %p175 = scmp.eq.s32.totalorder %s20, 0
      %p176 = por %p174, %p175
      %p177 = scmp.ne.s32.totalorder %s166, %s169
      %p178 = scmp.eq.s32.totalorder %s25, 1
      %p179 = por %p177, %p178
      %p180 = scmp.ne.s32.totalorder %s169, %s170
      %p181 = scmp.eq.s32.totalorder %s25, 0
      %p182 = por %p180, %p181
      %p183 = scmp.ne.s32.totalorder %s169, %s170
      %p184 = scmp.eq.s32.totalorder %s26, 1
      %p185 = por %p183, %p184
      %p187 = scmp.ne.s32.totalorder %s170, %s186
      %p188 = scmp.eq.s32.totalorder %s26, 0
      %p189 = por %p187, %p188
      %s190 = ssub.s32 %s20, %s27
      %p191 = scmp.eq.s32.totalorder %s190, 0
      %s193 = sadd.s32 %s192, 1
      %s194 = scalar_select %p191, %s192, %s193
      %p197 = pneg %p191
      %p198 = scmp.eq.s32.totalorder %s20, 1
      %p199 = por %p197, %p198
      %p200 = scmp.ne.s32.totalorder %s192, %s195
      %p201 = scmp.eq.s32.totalorder %s20, 0
      %p202 = por %p200, %p201
      %p203 = scmp.ne.s32.totalorder %s192, %s195
      %p204 = scmp.eq.s32.totalorder %s25, 1
      %p205 = por %p203, %p204
      %p206 = scmp.ne.s32.totalorder %s195, %s196
      %p207 = scmp.eq.s32.totalorder %s25, 0
      %p208 = por %p206, %p207
      %p209 = scmp.ne.s32.totalorder %s195, %s196
      %p210 = scmp.eq.s32.totalorder %s26, 1
      %p211 = por %p209, %p210
      %p213 = scmp.ne.s32.totalorder %s196, %s212
      %p214 = scmp.eq.s32.totalorder %s26, 0
      %p215 = por %p213, %p214
      %p216 = scmp.le.s32.totalorder 1, %s20
      %p217 = scmp.lt.s32.totalorder %s20, 3
      %p218 = pnand %p216, %p217
      %p219 = pneg %p218
      // Predicated region
      $region9: #{current_historical_attention_batched.1} parent=5 // pred_check
        _
      $region10: #{current_historical_attention_batched.1} parent=5 // pred_check_branch
        %221 = sbr.rel (%p218) target = $region12
      $region11: #{current_historical_attention_batched.1} parent=5 // pred_region
        %s222 = ssub.s32 %s20, 1
        // Predicated region
        $region13: #{current_historical_attention_batched.1} parent=11 // pred_check
          %p223 = pneg %p93
        $region14: #{current_historical_attention_batched.1} parent=11 // pred_check_branch
          %225 = sbr.rel (%p223) target = $region16
        $region15: #{current_historical_attention_batched.1} parent=11 // pred_region
          _
        $region16: #{current_historical_attention_batched.1} parent=11 // pred_fallthru
          _
        // Predicated region
        $region17: #{current_historical_attention_batched.1} parent=11 // pred_check
          %p226 = pneg %p114
        $region18: #{current_historical_attention_batched.1} parent=11 // pred_check_branch
          %228 = sbr.rel (%p226) target = $region20
        $region19: #{current_historical_attention_batched.1} parent=11 // pred_region
          _
        $region20: #{current_historical_attention_batched.1} parent=11 // pred_fallthru
          _
        // Predicated region
        $region21: #{current_historical_attention_batched.1} parent=11 // pred_check
          %p229 = pneg %p135
        $region22: #{current_historical_attention_batched.1} parent=11 // pred_check_branch
          %231 = sbr.rel (%p229) target = $region24
        $region23: #{current_historical_attention_batched.1} parent=11 // pred_region
          _
        $region24: #{current_historical_attention_batched.1} parent=11 // pred_fallthru
          _
        // Predicated region
        $region25: #{current_historical_attention_batched.1} parent=11 // pred_check
          %p232 = pneg %p156
        $region26: #{current_historical_attention_batched.1} parent=11 // pred_check_branch
          %234 = sbr.rel (%p232) target = $region28
        $region27: #{current_historical_attention_batched.1} parent=11 // pred_region
          _
        $region28: #{current_historical_attention_batched.1} parent=11 // pred_fallthru
          _
      $region12: #{current_historical_attention_batched.1} parent=5 // pred_fallthru
        _
      %p235 = scmp.lt.s32.totalorder %s20, 2
      // Predicated region
      $region29: #{current_historical_attention_batched.1} parent=5 // pred_check
        %p236 = pneg %p235
      $region30: #{current_historical_attention_batched.1} parent=5 // pred_check_branch
        %238 = sbr.rel (%p236) target = $region32
      $region31: #{current_historical_attention_batched.1} parent=5 // pred_region
        // Predicated region
        $region33: #{current_historical_attention_batched.1} parent=31 // pred_check
          %p239 = pneg %p40
        $region34: #{current_historical_attention_batched.1} parent=31 // pred_check_branch
          %241 = sbr.rel (%p239) target = $region36
        $region35: #{current_historical_attention_batched.1} parent=31 // pred_region
          %s242 = smul.u32 2, %s20
          %p243 = scmp.lt.s32.totalorder %s242, 3
          %s244 = scalar_select %p243, %s242, 3
          %s245 = smul.addr %s244, 8
          %s246 = scalar_lea.vmem %s0, %s245
          %s247 = smul.u32 2, %s20
        $region36: #{current_historical_attention_batched.1} parent=31 // pred_fallthru
          _
        // Predicated region
        $region37: #{current_historical_attention_batched.1} parent=31 // pred_check
          %p248 = pneg %p66
        $region38: #{current_historical_attention_batched.1} parent=31 // pred_check_branch
          %250 = sbr.rel (%p248) target = $region40
        $region39: #{current_historical_attention_batched.1} parent=31 // pred_region
          %s251 = sand.u32 %s56, 1
          %s252 = scalar_lea.sflag [#allocation3], %s251
          %s253 = sand.u32 %s56, 1
          %s254 = smul.addr %s253, 128
          %s255 = scalar_lea.vmem [#allocation2], %s254
          %s256 = smul.u32 16, %s20
          %s258 = ssub.s32 2048, 2048
          %259 = vsyncadd %s252, %s258
          %s260 = smul.addr %s256, 128
          %s261 = scalar_lea.hbm %s1, %s260
          %s262 = sshll.u32 %s255, 4
          %s263 = int_to_ptr.vmem [resolvable:$true] %s262
          %268 = dma.hbm_to_vmem [thread:$0]  %s261, 2048, %s263, %s252, 128, 128, 8
        $region40: #{current_historical_attention_batched.1} parent=31 // pred_fallthru
          _
      $region32: #{current_historical_attention_batched.1} parent=5 // pred_fallthru
        _
      %p269 = scmp.le.s32.totalorder 1, %s20
      %p270 = scmp.lt.s32.totalorder %s20, 3
      %p271 = pnand %p269, %p270
      %p272 = pneg %p271
      // Predicated region
      $region41: #{current_historical_attention_batched.1} parent=5 // pred_check
        _
      $region42: #{current_historical_attention_batched.1} parent=5 // pred_check_branch
        %274 = sbr.rel (%p271) target = $region44
      $region43: #{current_historical_attention_batched.1} parent=5 // pred_region
        %s275 = ssub.s32 %s20, 1
        %s276 = sand.u32 %s59, 1
        %s277 = scalar_lea.sflag [#allocation3], %s276
        %s278 = sand.u32 %s59, 1
        %s279 = smul.addr %s278, 128
        %s280 = scalar_lea.vmem [#allocation2], %s279
        // Predicated region
        $region45: #{current_historical_attention_batched.1} parent=43 // pred_check
          %p281 = pneg %p72
        $region46: #{current_historical_attention_batched.1} parent=43 // pred_check_branch
          %283 = sbr.rel (%p281) target = $region48
        $region47: #{current_historical_attention_batched.1} parent=43 // pred_region
          %284 = dma.done %s277, 2048
        $region48: #{current_historical_attention_batched.1} parent=43 // pred_fallthru
          _
        %s285 = smul.u32 2, %s25
        %p286 = scmp.lt.s32.totalorder %s285, 3
        %s287 = scalar_select %p286, %s285, 3
        %s288 = smul.addr %s287, 8
        %s289 = scalar_lea.vmem %s0, %s288
        %p290 = pneg %p46
        %p291 = pneg %p43
        %s292 = sand.u32 %s59, 1
        %s293 = scalar_lea.sflag [#allocation3], %s292
        %s294 = sand.u32 %s59, 1
        %s295 = smul.addr %s294, 128
        %s296 = scalar_lea.vmem [#allocation2], %s295
        %p297 = pneg %p72
        %p298 = pneg %p69
        %p299 = pneg %p93
        %p300 = pneg %p90
        %p301 = pneg %p114
        %p302 = pneg %p111
        %p303 = pneg %p135
        %p304 = pneg %p132
        %p305 = pneg %p156
        %p306 = pneg %p153
        %p307 = pneg %p182
        %p308 = pneg %p179
        %s309 = sand.u32 %s169, 1
        %s310 = scalar_lea.sflag [#allocation4], %s309
        %s311 = sand.u32 %s169, 1
        %s312 = smul.addr %s311, 16
        %s313 = scalar_lea.vmem [#allocation5], %s312
        %p314 = pneg %p208
        %p315 = pneg %p205
        %p316 = scmp.lt.s32.totalorder %s25, 1
        %s317 = scalar_select %p316, %s25, 1
        %s318 = scalar_lea.vmem %s7, %s317
        %s319 = smul.u32 2, %s25
        %p320 = scmp.lt.s32.totalorder %s319, 3
        %s321 = scalar_select %p320, %s319, 3
        %s322 = smul.addr %s321, 8
        %s323 = scalar_lea.vmem %s0, %s322
        %s324 = smul.u32 2, %s25
        %s325 = smul.u32 16, %s25
        %s326 = smul.u32 2, %s25
        %p327 = scmp.lt.s32.totalorder %s25, 1
        %s328 = scalar_select %p327, %s25, 1
        %s329 = scalar_lea.vmem %s7, %s328
        %v330 = vld [vmem:[%s323] sm:$0xff]
        %v331 = vld [vmem:[%s323 + $0x8] sm:$0xff]
        %v332 = vld [vmem:[%s280] sm:$0xff]
        %v333 = vld [vmem:[%s280 + $0x8] sm:$0xff]
        %v334 = vld [vmem:[%s280 + $0x10] sm:$0xff]
        %v335 = vld [vmem:[%s280 + $0x18] sm:$0xff]
        %v336 = vld [vmem:[%s280 + $0x20] sm:$0xff]
        %v337 = vld [vmem:[%s280 + $0x28] sm:$0xff]
        %v338 = vld [vmem:[%s280 + $0x30] sm:$0xff]
        %v339 = vld [vmem:[%s280 + $0x38] sm:$0xff]
        %v340 = vld [vmem:[%s280 + $0x40] sm:$0xff]
        %v341 = vld [vmem:[%s280 + $0x48] sm:$0xff]
        %v342 = vld [vmem:[%s280 + $0x50] sm:$0xff]
        %v343 = vld [vmem:[%s280 + $0x58] sm:$0xff]
        %v344 = vld [vmem:[%s280 + $0x60] sm:$0xff]
        %v345 = vld [vmem:[%s280 + $0x68] sm:$0xff]
        %v346 = vld [vmem:[%s280 + $0x70] sm:$0xff]
        %v347 = vld [vmem:[%s280 + $0x78] sm:$0xff]
        %v348 = vld [vmem:[%s2] sm:$0xff]
        %v349 = vld [vmem:[%s2 + $0x8] sm:$0xff]
        %v350 = vld [vmem:[%s2 + $0x10] sm:$0xff]
        %v351 = vld [vmem:[%s2 + $0x18] sm:$0xff]
        %v352 = vld [vmem:[%s2 + $0x20] sm:$0xff]
        %v353 = vld [vmem:[%s2 + $0x28] sm:$0xff]
        %v354 = vld [vmem:[%s2 + $0x30] sm:$0xff]
        %v355 = vld [vmem:[%s2 + $0x38] sm:$0xff]
        %v356 = vld [vmem:[%s4] sm:$0x1]
        %v358 = vlaneseq
        %v359 = vshrl.u32 %v358, 7
        %v360 = vsub.s32 0, %v359
        %v361 = vrot.slane %v356, %v360
        %vm363 = vcmask 523264
        %v365 = vsel %vm363, %v330, 0
        %v368 = vsel %vm363, %v331, 0
        %370 = vmatprep.subr.mxu0 0.0
        %371 = vmatpush1.msra.mxu0 0.0
        %372 = vmatprep.subr.mxu0 0.0
        %373 = vmatpush1.msra.mxu0 0.0
        %374 = vmatprep.subr.mxu0 0.0
        %375 = vmatpush1.msra.mxu0 0.0
        %376 = vmatprep.subr.mxu0 0.0
        %377 = vmatpush1.msra.mxu0 0.0
        %378 = vmatprep.subr.mxu0 0.0
        %379 = vmatpush1.msra.mxu0 0.0
        %380 = vmatprep.subr.mxu0 0.0
        %381 = vmatpush1.msra.mxu0 0.0
        %382 = vmatprep.subr.mxu0 0.0
        %383 = vmatpush1.msra.mxu0 0.0
        %384 = vmatprep.subr.mxu0 0.0
        %385 = vmatpush1.msra.mxu0 0.0
        %386 = vmatprep.subr.mxu0 0.0
        %387 = vmatpush1.msra.mxu0 %v355
        %388 = vmatprep.subr.mxu0 0.0
        %389 = vmatpush1.msra.mxu0 %v354
        %390 = vmatprep.subr.mxu0 0.0
        %391 = vmatpush1.msra.mxu0 %v353
        %392 = vmatprep.subr.mxu0 0.0
        %393 = vmatpush1.msra.mxu0 %v352
        %394 = vmatprep.subr.mxu0 0.0
        %395 = vmatpush1.msra.mxu0 %v351
        %396 = vmatprep.subr.mxu0 0.0
        %397 = vmatpush1.msra.mxu0 %v350
        %398 = vmatprep.subr.mxu0 0.0
        %399 = vmatpush1.msra.mxu0 %v349
        %400 = vmatprep.subr.mxu0 0.0
        %401 = vmatpush1.msra.mxu0 %v348
        %402 = vmatprep.subr.mxu0 0.0
        %403 = vmatpush2.msra.mxu0 0.0
        %404 = vmatprep.subr.mxu0 0.0
        %405 = vmatpush2.msra.mxu0 0.0
        %406 = vmatprep.subr.mxu0 0.0
        %407 = vmatpush2.msra.mxu0 0.0
        %408 = vmatprep.subr.mxu0 0.0
        %409 = vmatpush2.msra.mxu0 0.0
        %410 = vmatprep.subr.mxu0 0.0
        %411 = vmatpush2.msra.mxu0 0.0
        %412 = vmatprep.subr.mxu0 0.0
        %413 = vmatpush2.msra.mxu0 0.0
        %414 = vmatprep.subr.mxu0 0.0
        %415 = vmatpush2.msra.mxu0 0.0
        %416 = vmatprep.subr.mxu0 0.0
        %417 = vmatpush2.msra.mxu0 0.0
        %418 = vmatprep.subr.mxu0 0.0
        %419 = vmatpush2.msra.mxu0 0.0
        %420 = vmatprep.subr.mxu0 0.0
        %421 = vmatpush2.msra.mxu0 0.0
        %422 = vmatprep.subr.mxu0 0.0
        %423 = vmatpush2.msra.mxu0 0.0
        %424 = vmatprep.subr.mxu0 0.0
        %425 = vmatpush2.msra.mxu0 0.0
        %426 = vmatprep.subr.mxu0 0.0
        %427 = vmatpush2.msra.mxu0 0.0
        %428 = vmatprep.subr.mxu0 0.0
        %429 = vmatpush2.msra.mxu0 0.0
        %430 = vmatprep.subr.mxu0 0.0
        %431 = vmatpush2.msra.mxu0 0.0
        %432 = vmatprep.subr.mxu0 0.0
        %433 = vmatpush2.msra.mxu0 0.0
        %434 = vmatprep.mubr.f32.mxu0 0.0
        %435 = vmatmul.mubr.f32.gmra.mxu0 %v365
        %v436 = vpop.f32.mrf.mxu0
        %v437 = vadd.f32 %v361, %v436
        %v438 = vpop.f32.mrf.mxu0
        %439 = vmatprep.mubr.f32.mxu0 0.0
        %440 = vmatmul.mubr.f32.gmra.mxu0 %v368
        %v441 = vpop.f32.mrf.mxu0
        %v442 = vadd.f32 %v361, %v441
        %v443 = vpop.f32.mrf.mxu0
        %444 = vdwg.mxu0
        %v445 = vld [vmem:[%s3] sm:$0xff]
        %v446 = vld [vmem:[%s3 + $0x8] sm:$0xff]
        %v447 = vld [vmem:[%s3 + $0x10] sm:$0xff]
        %v448 = vld [vmem:[%s3 + $0x18] sm:$0xff]
        %vm449 = vcmask 261120
        %v451 = vsel %vm449, %v332, 0
        %v454 = vsel %vm449, %v333, 0
        %v457 = vsel %vm449, %v334, 0
        %v460 = vsel %vm449, %v335, 0
        %v463 = vsel %vm449, %v336, 0
        %v466 = vsel %vm449, %v337, 0
        %v469 = vsel %vm449, %v338, 0
        %v472 = vsel %vm449, %v339, 0
        %v475 = vsel %vm449, %v340, 0
        %v478 = vsel %vm449, %v341, 0
        %v481 = vsel %vm449, %v342, 0
        %v484 = vsel %vm449, %v343, 0
        %v487 = vsel %vm449, %v344, 0
        %v490 = vsel %vm449, %v345, 0
        %v493 = vsel %vm449, %v346, 0
        %v496 = vsel %vm449, %v347, 0
        %498 = vmatprep.subr.mxu0 0.0
        %499 = vmatpush1.msra.mxu0 0.0
        %500 = vmatprep.subr.mxu0 0.0
        %501 = vmatpush1.msra.mxu0 0.0
        %502 = vmatprep.subr.mxu0 0.0
        %503 = vmatpush1.msra.mxu0 0.0
        %504 = vmatprep.subr.mxu0 0.0
        %505 = vmatpush1.msra.mxu0 0.0
        %506 = vmatprep.subr.mxu0 0.0
        %507 = vmatpush1.msra.mxu0 0.0
        %508 = vmatprep.subr.mxu0 0.0
        %509 = vmatpush1.msra.mxu0 0.0
        %510 = vmatprep.subr.mxu0 0.0
        %511 = vmatpush1.msra.mxu0 0.0
        %512 = vmatprep.subr.mxu0 0.0
        %513 = vmatpush1.msra.mxu0 0.0
        %514 = vmatprep.subr.mxu0 0.0
        %515 = vmatpush1.msra.mxu0 0.0
        %516 = vmatprep.subr.mxu0 0.0
        %517 = vmatpush1.msra.mxu0 0.0
        %518 = vmatprep.subr.mxu0 0.0
        %519 = vmatpush1.msra.mxu0 0.0
        %520 = vmatprep.subr.mxu0 0.0
        %521 = vmatpush1.msra.mxu0 0.0
        %522 = vmatprep.subr.mxu0 0.0
        %523 = vmatpush1.msra.mxu0 %v448
        %524 = vmatprep.subr.mxu0 0.0
        %525 = vmatpush1.msra.mxu0 %v447
        %526 = vmatprep.subr.mxu0 0.0
        %527 = vmatpush1.msra.mxu0 %v446
        %528 = vmatprep.subr.mxu0 0.0
        %529 = vmatpush1.msra.mxu0 %v445
        %530 = vmatprep.subr.mxu0 0.0
        %531 = vmatpush2.msra.mxu0 0.0
        %532 = vmatprep.subr.mxu0 0.0
        %533 = vmatpush2.msra.mxu0 0.0
        %534 = vmatprep.subr.mxu0 0.0
        %535 = vmatpush2.msra.mxu0 0.0
        %536 = vmatprep.subr.mxu0 0.0
        %537 = vmatpush2.msra.mxu0 0.0
        %538 = vmatprep.subr.mxu0 0.0
        %539 = vmatpush2.msra.mxu0 0.0
        %540 = vmatprep.subr.mxu0 0.0
        %541 = vmatpush2.msra.mxu0 0.0
        %542 = vmatprep.subr.mxu0 0.0
        %543 = vmatpush2.msra.mxu0 0.0
        %544 = vmatprep.subr.mxu0 0.0
        %545 = vmatpush2.msra.mxu0 0.0
        %546 = vmatprep.subr.mxu0 0.0
        %547 = vmatpush2.msra.mxu0 0.0
        %548 = vmatprep.subr.mxu0 0.0
        %549 = vmatpush2.msra.mxu0 0.0
        %550 = vmatprep.subr.mxu0 0.0
        %551 = vmatpush2.msra.mxu0 0.0
        %552 = vmatprep.subr.mxu0 0.0
        %553 = vmatpush2.msra.mxu0 0.0
        %554 = vmatprep.subr.mxu0 0.0
        %555 = vmatpush2.msra.mxu0 0.0
        %556 = vmatprep.subr.mxu0 0.0
        %557 = vmatpush2.msra.mxu0 0.0
        %558 = vmatprep.subr.mxu0 0.0
        %559 = vmatpush2.msra.mxu0 0.0
        %560 = vmatprep.subr.mxu0 0.0
        %561 = vmatpush2.msra.mxu0 0.0
        %562 = vmatprep.mubr.f32.mxu0 0.0
        %563 = vmatmul.mubr.f32.gmra.mxu0 %v451
        %v564 = vpop.f32.mrf.mxu0
        %v565 = vadd.f32 0.0, %v564
        %v566 = vpop.f32.mrf.mxu0
        %567 = vmatprep.mubr.f32.mxu0 0.0
        %568 = vmatmul.mubr.f32.gmra.mxu0 %v454
        %v569 = vpop.f32.mrf.mxu0
        %v570 = vadd.f32 0.0, %v569
        %v571 = vpop.f32.mrf.mxu0
        %572 = vmatprep.mubr.f32.mxu0 0.0
        %573 = vmatmul.mubr.f32.gmra.mxu0 %v457
        %v574 = vpop.f32.mrf.mxu0
        %v575 = vadd.f32 0.0, %v574
        %v576 = vpop.f32.mrf.mxu0
        %577 = vmatprep.mubr.f32.mxu0 0.0
        %578 = vmatmul.mubr.f32.gmra.mxu0 %v460
        %v579 = vpop.f32.mrf.mxu0
        %v580 = vadd.f32 0.0, %v579
        %v581 = vpop.f32.mrf.mxu0
        %582 = vmatprep.mubr.f32.mxu0 0.0
        %583 = vmatmul.mubr.f32.gmra.mxu0 %v463
        %v584 = vpop.f32.mrf.mxu0
        %v585 = vadd.f32 0.0, %v584
        %v586 = vpop.f32.mrf.mxu0
        %587 = vmatprep.mubr.f32.mxu0 0.0
        %588 = vmatmul.mubr.f32.gmra.mxu0 %v466
        %v589 = vpop.f32.mrf.mxu0
        %v590 = vadd.f32 0.0, %v589
        %v591 = vpop.f32.mrf.mxu0
        %592 = vmatprep.mubr.f32.mxu0 0.0
        %593 = vmatmul.mubr.f32.gmra.mxu0 %v469
        %v594 = vpop.f32.mrf.mxu0
        %v595 = vadd.f32 0.0, %v594
        %v596 = vpop.f32.mrf.mxu0
        %597 = vmatprep.mubr.f32.mxu0 0.0
        %598 = vmatmul.mubr.f32.gmra.mxu0 %v472
        %v599 = vpop.f32.mrf.mxu0
        %v600 = vadd.f32 0.0, %v599
        %v601 = vpop.f32.mrf.mxu0
        %602 = vmatprep.mubr.f32.mxu0 0.0
        %603 = vmatmul.mubr.f32.gmra.mxu0 %v475
        %v604 = vpop.f32.mrf.mxu0
        %v605 = vadd.f32 0.0, %v604
        %v606 = vpop.f32.mrf.mxu0
        %607 = vmatprep.mubr.f32.mxu0 0.0
        %608 = vmatmul.mubr.f32.gmra.mxu0 %v478
        %v609 = vpop.f32.mrf.mxu0
        %v610 = vadd.f32 0.0, %v609
        %v611 = vpop.f32.mrf.mxu0
        %612 = vmatprep.mubr.f32.mxu0 0.0
        %613 = vmatmul.mubr.f32.gmra.mxu0 %v481
        %v614 = vpop.f32.mrf.mxu0
        %v615 = vadd.f32 0.0, %v614
        %v616 = vpop.f32.mrf.mxu0
        %617 = vmatprep.mubr.f32.mxu0 0.0
        %618 = vmatmul.mubr.f32.gmra.mxu0 %v484
        %v619 = vpop.f32.mrf.mxu0
        %v620 = vadd.f32 0.0, %v619
        %v621 = vpop.f32.mrf.mxu0
        %622 = vmatprep.mubr.f32.mxu0 0.0
        %623 = vmatmul.mubr.f32.gmra.mxu0 %v487
        %v624 = vpop.f32.mrf.mxu0
        %v625 = vadd.f32 0.0, %v624
        %v626 = vpop.f32.mrf.mxu0
        %627 = vmatprep.mubr.f32.mxu0 0.0
        %628 = vmatmul.mubr.f32.gmra.mxu0 %v490
        %v629 = vpop.f32.mrf.mxu0
        %v630 = vadd.f32 0.0, %v629
        %v631 = vpop.f32.mrf.mxu0
        %632 = vmatprep.mubr.f32.mxu0 0.0
        %633 = vmatmul.mubr.f32.gmra.mxu0 %v493
        %v634 = vpop.f32.mrf.mxu0
        %v635 = vadd.f32 0.0, %v634
        %v636 = vpop.f32.mrf.mxu0
        %637 = vmatprep.mubr.f32.mxu0 0.0
        %638 = vmatmul.mubr.f32.gmra.mxu0 %v496
        %v639 = vpop.f32.mrf.mxu0
        %v640 = vadd.f32 0.0, %v639
        %v641 = vpop.f32.mrf.mxu0
        %642 = vdwg.mxu0
        %v645 = vcombine.high %v437, %v437
        %v647 = vunpack.c.l.s4 1966171168
        %v648 = vunpack.c.0.s8 %v647
        %v649 = vlaneseq
        %v650 = vshrl.u32 %v649, 7
        %v651 = vsub.s32 %v648, %v650
        %v652 = vrot.slane %v437, %v651
        %v654 = vunpack.c.l.s4 1966171168
        %v655 = vunpack.c.0.s8 %v654
        %v656 = vlaneseq
        %v657 = vshrl.u32 %v656, 7
        %v658 = vsub.s32 %v655, %v657
        %v659 = vrot.slane %v645, %v658
        %v660 = vcombine.high %v652, %v652
        %v661 = vcombine.high %v659, %v659
        %v663 = vunpack.c.l.s4 1966171168
        %v664 = vunpack.c.0.s8 %v663
        %v665 = vlaneseq
        %v666 = vshrl.u32 %v665, 7
        %v667 = vsub.s32 %v664, %v666
        %v668 = vrot.slane %v652, %v667
        %v670 = vunpack.c.l.s4 1966171168
        %v671 = vunpack.c.0.s8 %v670
        %v672 = vlaneseq
        %v673 = vshrl.u32 %v672, 7
        %v674 = vsub.s32 %v671, %v673
        %v675 = vrot.slane %v659, %v674
        %v677 = vunpack.c.l.s4 1966171168
        %v678 = vunpack.c.0.s8 %v677
        %v679 = vlaneseq
        %v680 = vshrl.u32 %v679, 7
        %v681 = vsub.s32 %v678, %v680
        %v682 = vrot.slane %v660, %v681
        %v684 = vunpack.c.l.s4 1966171168
        %v685 = vunpack.c.0.s8 %v684
        %v686 = vlaneseq
        %v687 = vshrl.u32 %v686, 7
        %v688 = vsub.s32 %v685, %v687
        %v689 = vrot.slane %v661, %v688
        %v690 = vcombine.high %v668, %v668
        %v691 = vcombine.high %v675, %v675
        %v692 = vcombine.high %v682, %v682
        %v693 = vcombine.high %v689, %v689
        %v694 = vcombine.high %v442, %v442
        %v696 = vunpack.c.l.s4 1966171168
        %v697 = vunpack.c.0.s8 %v696
        %v698 = vlaneseq
        %v699 = vshrl.u32 %v698, 7
        %v700 = vsub.s32 %v697, %v699
        %v701 = vrot.slane %v442, %v700
        %v703 = vunpack.c.l.s4 1966171168
        %v704 = vunpack.c.0.s8 %v703
        %v705 = vlaneseq
        %v706 = vshrl.u32 %v705, 7
        %v707 = vsub.s32 %v704, %v706
        %v708 = vrot.slane %v694, %v707
        %v709 = vcombine.high %v701, %v701
        %v710 = vcombine.high %v708, %v708
        %v712 = vunpack.c.l.s4 1966171168
        %v713 = vunpack.c.0.s8 %v712
        %v714 = vlaneseq
        %v715 = vshrl.u32 %v714, 7
        %v716 = vsub.s32 %v713, %v715
        %v717 = vrot.slane %v701, %v716
        %v719 = vunpack.c.l.s4 1966171168
        %v720 = vunpack.c.0.s8 %v719
        %v721 = vlaneseq
        %v722 = vshrl.u32 %v721, 7
        %v723 = vsub.s32 %v720, %v722
        %v724 = vrot.slane %v708, %v723
        %v726 = vunpack.c.l.s4 1966171168
        %v727 = vunpack.c.0.s8 %v726
        %v728 = vlaneseq
        %v729 = vshrl.u32 %v728, 7
        %v730 = vsub.s32 %v727, %v729
        %v731 = vrot.slane %v709, %v730
        %v733 = vunpack.c.l.s4 1966171168
        %v734 = vunpack.c.0.s8 %v733
        %v735 = vlaneseq
        %v736 = vshrl.u32 %v735, 7
        %v737 = vsub.s32 %v734, %v736
        %v738 = vrot.slane %v710, %v737
        %v739 = vcombine.high %v717, %v717
        %v740 = vcombine.high %v724, %v724
        %v741 = vcombine.high %v731, %v731
        %v742 = vcombine.high %v738, %v738
        %v743 = vlaneseq
        %v744 = vshrl.u32 %v743, 7
        %v745 = vsub.s32 0, %v744
        %v746 = vrot.slane %v668, %v745
        %v747 = vlaneseq
        %v748 = vshrl.u32 %v747, 7
        %v749 = vsub.s32 0, %v748
        %v750 = vrot.slane %v682, %v749
        %v751 = vlaneseq
        %v752 = vshrl.u32 %v751, 7
        %v753 = vsub.s32 0, %v752
        %v754 = vrot.slane %v690, %v753
        %v755 = vlaneseq
        %v756 = vshrl.u32 %v755, 7
        %v757 = vsub.s32 0, %v756
        %v758 = vrot.slane %v692, %v757
        %v759 = vlaneseq
        %v760 = vshrl.u32 %v759, 7
        %v761 = vsub.s32 0, %v760
        %v762 = vrot.slane %v675, %v761
        %v763 = vlaneseq
        %v764 = vshrl.u32 %v763, 7
        %v765 = vsub.s32 0, %v764
        %v766 = vrot.slane %v689, %v765
        %v767 = vlaneseq
        %v768 = vshrl.u32 %v767, 7
        %v769 = vsub.s32 0, %v768
        %v770 = vrot.slane %v691, %v769
        %v771 = vlaneseq
        %v772 = vshrl.u32 %v771, 7
        %v773 = vsub.s32 0, %v772
        %v774 = vrot.slane %v693, %v773
        %v775 = vlaneseq
        %v776 = vshrl.u32 %v775, 7
        %v777 = vsub.s32 0, %v776
        %v778 = vrot.slane %v717, %v777
        %v779 = vlaneseq
        %v780 = vshrl.u32 %v779, 7
        %v781 = vsub.s32 0, %v780
        %v782 = vrot.slane %v731, %v781
        %v783 = vlaneseq
        %v784 = vshrl.u32 %v783, 7
        %v785 = vsub.s32 0, %v784
        %v786 = vrot.slane %v739, %v785
        %v787 = vlaneseq
        %v788 = vshrl.u32 %v787, 7
        %v789 = vsub.s32 0, %v788
        %v790 = vrot.slane %v741, %v789
        %v791 = vlaneseq
        %v792 = vshrl.u32 %v791, 7
        %v793 = vsub.s32 0, %v792
        %v794 = vrot.slane %v724, %v793
        %v795 = vlaneseq
        %v796 = vshrl.u32 %v795, 7
        %v797 = vsub.s32 0, %v796
        %v798 = vrot.slane %v738, %v797
        %v799 = vlaneseq
        %v800 = vshrl.u32 %v799, 7
        %v801 = vsub.s32 0, %v800
        %v802 = vrot.slane %v740, %v801
        %v803 = vlaneseq
        %v804 = vshrl.u32 %v803, 7
        %v805 = vsub.s32 0, %v804
        %v806 = vrot.slane %v742, %v805
        %v823 = vadd.f32 %v565, %v746
        %v824 = vadd.f32 %v570, %v750
        %v825 = vadd.f32 %v575, %v754
        %v826 = vadd.f32 %v580, %v758
        %v827 = vadd.f32 %v585, %v762
        %v828 = vadd.f32 %v590, %v766
        %v829 = vadd.f32 %v595, %v770
        %v830 = vadd.f32 %v600, %v774
        %v831 = vadd.f32 %v605, %v778
        %v832 = vadd.f32 %v610, %v782
        %v833 = vadd.f32 %v615, %v786
        %v834 = vadd.f32 %v620, %v790
        %v835 = vadd.f32 %v625, %v794
        %v836 = vadd.f32 %v630, %v798
        %v837 = vadd.f32 %v635, %v802
        %v838 = vadd.f32 %v640, %v806
        %v839 = vtanh.pop %v823
        %v840 = vtanh.pop %v824
        %v841 = vtanh.pop %v825
        %v842 = vtanh.pop %v826
        %v843 = vtanh.pop %v827
        %v844 = vtanh.pop %v828
        %v845 = vtanh.pop %v829
        %v846 = vtanh.pop %v830
        %v847 = vtanh.pop %v831
        %v848 = vtanh.pop %v832
        %v849 = vtanh.pop %v833
        %v850 = vtanh.pop %v834
        %v851 = vtanh.pop %v835
        %v852 = vtanh.pop %v836
        %v853 = vtanh.pop %v837
        %v854 = vtanh.pop %v838
        %v855 = vld [vmem:[%s5] sm:$0x1]
        %v857 = vlaneseq
        %v858 = vshrl.u32 %v857, 7
        %v859 = vsub.s32 0, %v858
        %v860 = vrot.slane %v855, %v859
        %v862 = vmul.f32 %v839, %v860
        %v863 = vmul.f32 %v840, %v860
        %v864 = vmul.f32 %v841, %v860
        %v865 = vmul.f32 %v842, %v860
        %v866 = vmul.f32 %v843, %v860
        %v867 = vmul.f32 %v844, %v860
        %v868 = vmul.f32 %v845, %v860
        %v869 = vmul.f32 %v846, %v860
        %v870 = vmul.f32 %v847, %v860
        %v871 = vmul.f32 %v848, %v860
        %v872 = vmul.f32 %v849, %v860
        %v873 = vmul.f32 %v850, %v860
        %v874 = vmul.f32 %v851, %v860
        %v875 = vmul.f32 %v852, %v860
        %v876 = vmul.f32 %v853, %v860
        %v877 = vmul.f32 %v854, %v860
        %v878 = vsel %vm449, %v862, 0.0
        %879 = vadd.xlane.f32.xlu0 %v878
        %v880 = vpop.xlane.xlu0 %879
        %v881 = vsel %vm449, %v863, 0.0
        %882 = vadd.xlane.f32.xlu0 %v881
        %v883 = vpop.xlane.xlu0 %882
        %v884 = vsel %vm449, %v864, 0.0
        %885 = vadd.xlane.f32.xlu0 %v884
        %v886 = vpop.xlane.xlu0 %885
        %v887 = vsel %vm449, %v865, 0.0
        %888 = vadd.xlane.f32.xlu0 %v887
        %v889 = vpop.xlane.xlu0 %888
        %v890 = vsel %vm449, %v866, 0.0
        %891 = vadd.xlane.f32.xlu0 %v890
        %v892 = vpop.xlane.xlu0 %891
        %v893 = vsel %vm449, %v867, 0.0
        %894 = vadd.xlane.f32.xlu0 %v893
        %v895 = vpop.xlane.xlu0 %894
        %v896 = vsel %vm449, %v868, 0.0
        %897 = vadd.xlane.f32.xlu0 %v896
        %v898 = vpop.xlane.xlu0 %897
        %v899 = vsel %vm449, %v869, 0.0
        %900 = vadd.xlane.f32.xlu0 %v899
        %v901 = vpop.xlane.xlu0 %900
        %v902 = vsel %vm449, %v870, 0.0
        %903 = vadd.xlane.f32.xlu0 %v902
        %v904 = vpop.xlane.xlu0 %903
        %v905 = vsel %vm449, %v871, 0.0
        %906 = vadd.xlane.f32.xlu0 %v905
        %v907 = vpop.xlane.xlu0 %906
        %v908 = vsel %vm449, %v872, 0.0
        %909 = vadd.xlane.f32.xlu0 %v908
        %v910 = vpop.xlane.xlu0 %909
        %v911 = vsel %vm449, %v873, 0.0
        %912 = vadd.xlane.f32.xlu0 %v911
        %v913 = vpop.xlane.xlu0 %912
        %v914 = vsel %vm449, %v874, 0.0
        %915 = vadd.xlane.f32.xlu0 %v914
        %v916 = vpop.xlane.xlu0 %915
        %v917 = vsel %vm449, %v875, 0.0
        %918 = vadd.xlane.f32.xlu0 %v917
        %v919 = vpop.xlane.xlu0 %918
        %v920 = vsel %vm449, %v876, 0.0
        %921 = vadd.xlane.f32.xlu0 %v920
        %v922 = vpop.xlane.xlu0 %921
        %v923 = vsel %vm449, %v877, 0.0
        %924 = vadd.xlane.f32.xlu0 %v923
        %v925 = vpop.xlane.xlu0 %924
        %v942 = vlaneseq
        %v943 = vand.u32 %v942, 127
        %v944 = vlaneseq
        %v945 = vshrl.u32 %v944, 7
        %v946 = vsub.s32 %v943, %v945
        %v947 = vrot.slane %v880, %v946
        %v948 = vlaneseq
        %v949 = vshrl.u32 %v948, 7
        %v950 = vsub.s32 %v943, %v949
        %v951 = vrot.slane %v883, %v950
        %v952 = vlaneseq
        %v953 = vshrl.u32 %v952, 7
        %v954 = vsub.s32 %v943, %v953
        %v955 = vrot.slane %v886, %v954
        %v956 = vlaneseq
        %v957 = vshrl.u32 %v956, 7
        %v958 = vsub.s32 %v943, %v957
        %v959 = vrot.slane %v889, %v958
        %v960 = vlaneseq
        %v961 = vshrl.u32 %v960, 7
        %v962 = vsub.s32 %v943, %v961
        %v963 = vrot.slane %v892, %v962
        %v964 = vlaneseq
        %v965 = vshrl.u32 %v964, 7
        %v966 = vsub.s32 %v943, %v965
        %v967 = vrot.slane %v895, %v966
        %v968 = vlaneseq
        %v969 = vshrl.u32 %v968, 7
        %v970 = vsub.s32 %v943, %v969
        %v971 = vrot.slane %v898, %v970
        %v972 = vlaneseq
        %v973 = vshrl.u32 %v972, 7
        %v974 = vsub.s32 %v943, %v973
        %v975 = vrot.slane %v901, %v974
        %v976 = vlaneseq
        %v977 = vshrl.u32 %v976, 7
        %v978 = vsub.s32 %v943, %v977
        %v979 = vrot.slane %v904, %v978
        %v980 = vlaneseq
        %v981 = vshrl.u32 %v980, 7
        %v982 = vsub.s32 %v943, %v981
        %v983 = vrot.slane %v907, %v982
        %v984 = vlaneseq
        %v985 = vshrl.u32 %v984, 7
        %v986 = vsub.s32 %v943, %v985
        %v987 = vrot.slane %v910, %v986
        %v988 = vlaneseq
        %v989 = vshrl.u32 %v988, 7
        %v990 = vsub.s32 %v943, %v989
        %v991 = vrot.slane %v913, %v990
        %v992 = vlaneseq
        %v993 = vshrl.u32 %v992, 7
        %v994 = vsub.s32 %v943, %v993
        %v995 = vrot.slane %v916, %v994
        %v996 = vlaneseq
        %v997 = vshrl.u32 %v996, 7
        %v998 = vsub.s32 %v943, %v997
        %v999 = vrot.slane %v919, %v998
        %v1000 = vlaneseq
        %v1001 = vshrl.u32 %v1000, 7
        %v1002 = vsub.s32 %v943, %v1001
        %v1003 = vrot.slane %v922, %v1002
        %v1004 = vlaneseq
        %v1005 = vshrl.u32 %v1004, 7
        %v1006 = vsub.s32 %v943, %v1005
        %v1007 = vrot.slane %v925, %v1006
        %vm1008 = vcmask 1041409
        %v1009 = vsel %vm1008, %v951, %v947
        %vm1010 = vcmask 1042434
        %v1011 = vsel %vm1010, %v955, %v1009
        %vm1012 = vcmask 1043459
        %v1013 = vsel %vm1012, %v959, %v1011
        %vm1014 = vcmask 1044484
        %v1015 = vsel %vm1014, %v963, %v1013
        %vm1016 = vcmask 1045509
        %v1017 = vsel %vm1016, %v967, %v1015
        %vm1018 = vcmask 1046534
        %v1019 = vsel %vm1018, %v971, %v1017
        %vm1020 = vcmask 1047559
        %v1021 = vsel %vm1020, %v975, %v1019
        %v1022 = vsel %vm1008, %v983, %v979
        %v1023 = vsel %vm1010, %v987, %v1022
        %v1024 = vsel %vm1012, %v991, %v1023
        %v1025 = vsel %vm1014, %v995, %v1024
        %v1026 = vsel %vm1016, %v999, %v1025
        %v1027 = vsel %vm1018, %v1003, %v1026
        %v1028 = vsel %vm1020, %v1007, %v1027
        %vm1031 = vcmask 64512
        %v1032 = vsel %vm1031, %v1021, -inf
        %1033 = vmax.xlane.f32.xlu0 %v1032
        %v1034 = vpop.xlane.xlu0 %1033
        %v1035 = vsel %vm1031, %v1028, -inf
        %1036 = vmax.xlane.f32.xlu0 %v1035
        %v1037 = vpop.xlane.xlu0 %1036
        %v1040 = vlaneseq
        %v1041 = vshrl.u32 %v1040, 7
        %v1042 = vsub.s32 0, %v1041
        %v1043 = vrot.slane %v1034, %v1042
        %v1044 = vlaneseq
        %v1045 = vshrl.u32 %v1044, 7
        %v1046 = vsub.s32 1, %v1045
        %v1047 = vrot.slane %v1034, %v1046
        %v1048 = vlaneseq
        %v1049 = vshrl.u32 %v1048, 7
        %v1050 = vsub.s32 2, %v1049
        %v1051 = vrot.slane %v1034, %v1050
        %v1052 = vlaneseq
        %v1053 = vshrl.u32 %v1052, 7
        %v1054 = vsub.s32 3, %v1053
        %v1055 = vrot.slane %v1034, %v1054
        %v1056 = vlaneseq
        %v1057 = vshrl.u32 %v1056, 7
        %v1058 = vsub.s32 4, %v1057
        %v1059 = vrot.slane %v1034, %v1058
        %v1060 = vlaneseq
        %v1061 = vshrl.u32 %v1060, 7
        %v1062 = vsub.s32 5, %v1061
        %v1063 = vrot.slane %v1034, %v1062
        %v1064 = vlaneseq
        %v1065 = vshrl.u32 %v1064, 7
        %v1066 = vsub.s32 6, %v1065
        %v1067 = vrot.slane %v1034, %v1066
        %v1068 = vlaneseq
        %v1069 = vshrl.u32 %v1068, 7
        %v1070 = vsub.s32 7, %v1069
        %v1071 = vrot.slane %v1034, %v1070
        %v1072 = vlaneseq
        %v1073 = vshrl.u32 %v1072, 7
        %v1074 = vsub.s32 0, %v1073
        %v1075 = vrot.slane %v1037, %v1074
        %v1076 = vlaneseq
        %v1077 = vshrl.u32 %v1076, 7
        %v1078 = vsub.s32 1, %v1077
        %v1079 = vrot.slane %v1037, %v1078
        %v1080 = vlaneseq
        %v1081 = vshrl.u32 %v1080, 7
        %v1082 = vsub.s32 2, %v1081
        %v1083 = vrot.slane %v1037, %v1082
        %v1084 = vlaneseq
        %v1085 = vshrl.u32 %v1084, 7
        %v1086 = vsub.s32 3, %v1085
        %v1087 = vrot.slane %v1037, %v1086
        %v1088 = vlaneseq
        %v1089 = vshrl.u32 %v1088, 7
        %v1090 = vsub.s32 4, %v1089
        %v1091 = vrot.slane %v1037, %v1090
        %v1092 = vlaneseq
        %v1093 = vshrl.u32 %v1092, 7
        %v1094 = vsub.s32 5, %v1093
        %v1095 = vrot.slane %v1037, %v1094
        %v1096 = vlaneseq
        %v1097 = vshrl.u32 %v1096, 7
        %v1098 = vsub.s32 6, %v1097
        %v1099 = vrot.slane %v1037, %v1098
        %v1100 = vlaneseq
        %v1101 = vshrl.u32 %v1100, 7
        %v1102 = vsub.s32 7, %v1101
        %v1103 = vrot.slane %v1037, %v1102
        %v1120 = vsub.f32 %v880, %v1043
        %v1121 = vsub.f32 %v883, %v1047
        %v1122 = vsub.f32 %v886, %v1051
        %v1123 = vsub.f32 %v889, %v1055
        %v1124 = vsub.f32 %v892, %v1059
        %v1125 = vsub.f32 %v895, %v1063
        %v1126 = vsub.f32 %v898, %v1067
        %v1127 = vsub.f32 %v901, %v1071
        %v1128 = vsub.f32 %v904, %v1075
        %v1129 = vsub.f32 %v907, %v1079
        %v1130 = vsub.f32 %v910, %v1083
        %v1131 = vsub.f32 %v913, %v1087
        %v1132 = vsub.f32 %v916, %v1091
        %v1133 = vsub.f32 %v919, %v1095
        %v1134 = vsub.f32 %v922, %v1099
        %v1135 = vsub.f32 %v925, %v1103
        %v1136 = vmul.f32 %v1120, 1.442695
        %v1137 = vpow.pop %v1136
        %v1138 = vmul.f32 %v1121, 1.442695
        %v1139 = vpow.pop %v1138
        %v1140 = vmul.f32 %v1122, 1.442695
        %v1141 = vpow.pop %v1140
        %v1142 = vmul.f32 %v1123, 1.442695
        %v1143 = vpow.pop %v1142
        %v1144 = vmul.f32 %v1124, 1.442695
        %v1145 = vpow.pop %v1144
        %v1146 = vmul.f32 %v1125, 1.442695
        %v1147 = vpow.pop %v1146
        %v1148 = vmul.f32 %v1126, 1.442695
        %v1149 = vpow.pop %v1148
        %v1150 = vmul.f32 %v1127, 1.442695
        %v1151 = vpow.pop %v1150
        %v1152 = vmul.f32 %v1128, 1.442695
        %v1153 = vpow.pop %v1152
        %v1154 = vmul.f32 %v1129, 1.442695
        %v1155 = vpow.pop %v1154
        %v1156 = vmul.f32 %v1130, 1.442695
        %v1157 = vpow.pop %v1156
        %v1158 = vmul.f32 %v1131, 1.442695
        %v1159 = vpow.pop %v1158
        %v1160 = vmul.f32 %v1132, 1.442695
        %v1161 = vpow.pop %v1160
        %v1162 = vmul.f32 %v1133, 1.442695
        %v1163 = vpow.pop %v1162
        %v1164 = vmul.f32 %v1134, 1.442695
        %v1165 = vpow.pop %v1164
        %v1166 = vmul.f32 %v1135, 1.442695
        %v1167 = vpow.pop %v1166
        %1184 = vset.pattern.permute.xlu0 0
        %1185 = vperm.xlu0 %1184, %v1137
        %v1186 = vpop.permute.xlu0 %1185
        %1187 = vset.pattern.permute.xlu0 0
        %1188 = vperm.xlu0 %1187, %v1139
        %v1189 = vpop.permute.xlu0 %1188
        %1190 = vset.pattern.permute.xlu0 0
        %1191 = vperm.xlu0 %1190, %v1141
        %v1192 = vpop.permute.xlu0 %1191
        %1193 = vset.pattern.permute.xlu0 0
        %1194 = vperm.xlu0 %1193, %v1143
        %v1195 = vpop.permute.xlu0 %1194
        %1196 = vset.pattern.permute.xlu0 0
        %1197 = vperm.xlu0 %1196, %v1145
        %v1198 = vpop.permute.xlu0 %1197
        %1199 = vset.pattern.permute.xlu0 0
        %1200 = vperm.xlu0 %1199, %v1147
        %v1201 = vpop.permute.xlu0 %1200
        %1202 = vset.pattern.permute.xlu0 0
        %1203 = vperm.xlu0 %1202, %v1149
        %v1204 = vpop.permute.xlu0 %1203
        %1205 = vset.pattern.permute.xlu0 0
        %1206 = vperm.xlu0 %1205, %v1151
        %v1207 = vpop.permute.xlu0 %1206
        %1208 = vset.pattern.permute.xlu0 0
        %1209 = vperm.xlu0 %1208, %v1153
        %v1210 = vpop.permute.xlu0 %1209
        %1211 = vset.pattern.permute.xlu0 0
        %1212 = vperm.xlu0 %1211, %v1155
        %v1213 = vpop.permute.xlu0 %1212
        %1214 = vset.pattern.permute.xlu0 0
        %1215 = vperm.xlu0 %1214, %v1157
        %v1216 = vpop.permute.xlu0 %1215
        %1217 = vset.pattern.permute.xlu0 0
        %1218 = vperm.xlu0 %1217, %v1159
        %v1219 = vpop.permute.xlu0 %1218
        %1220 = vset.pattern.permute.xlu0 0
        %1221 = vperm.xlu0 %1220, %v1161
        %v1222 = vpop.permute.xlu0 %1221
        %1223 = vset.pattern.permute.xlu0 0
        %1224 = vperm.xlu0 %1223, %v1163
        %v1225 = vpop.permute.xlu0 %1224
        %1226 = vset.pattern.permute.xlu0 0
        %1227 = vperm.xlu0 %1226, %v1165
        %v1228 = vpop.permute.xlu0 %1227
        %1229 = vset.pattern.permute.xlu0 0
        %1230 = vperm.xlu0 %1229, %v1167
        %v1231 = vpop.permute.xlu0 %1230
        %v1232 = vlaneseq
        %v1233 = vshrl.u32 %v1232, 7
        %v1234 = vsub.s32 %v943, %v1233
        %v1235 = vrot.slane %v1186, %v1234
        %v1236 = vlaneseq
        %v1237 = vshrl.u32 %v1236, 7
        %v1238 = vsub.s32 %v943, %v1237
        %v1239 = vrot.slane %v1189, %v1238
        %v1240 = vlaneseq
        %v1241 = vshrl.u32 %v1240, 7
        %v1242 = vsub.s32 %v943, %v1241
        %v1243 = vrot.slane %v1192, %v1242
        %v1244 = vlaneseq
        %v1245 = vshrl.u32 %v1244, 7
        %v1246 = vsub.s32 %v943, %v1245
        %v1247 = vrot.slane %v1195, %v1246
        %v1248 = vlaneseq
        %v1249 = vshrl.u32 %v1248, 7
        %v1250 = vsub.s32 %v943, %v1249
        %v1251 = vrot.slane %v1198, %v1250
        %v1252 = vlaneseq
        %v1253 = vshrl.u32 %v1252, 7
        %v1254 = vsub.s32 %v943, %v1253
        %v1255 = vrot.slane %v1201, %v1254
        %v1256 = vlaneseq
        %v1257 = vshrl.u32 %v1256, 7
        %v1258 = vsub.s32 %v943, %v1257
        %v1259 = vrot.slane %v1204, %v1258
        %v1260 = vlaneseq
        %v1261 = vshrl.u32 %v1260, 7
        %v1262 = vsub.s32 %v943, %v1261
        %v1263 = vrot.slane %v1207, %v1262
        %v1264 = vlaneseq
        %v1265 = vshrl.u32 %v1264, 7
        %v1266 = vsub.s32 %v943, %v1265
        %v1267 = vrot.slane %v1210, %v1266
        %v1268 = vlaneseq
        %v1269 = vshrl.u32 %v1268, 7
        %v1270 = vsub.s32 %v943, %v1269
        %v1271 = vrot.slane %v1213, %v1270
        %v1272 = vlaneseq
        %v1273 = vshrl.u32 %v1272, 7
        %v1274 = vsub.s32 %v943, %v1273
        %v1275 = vrot.slane %v1216, %v1274
        %v1276 = vlaneseq
        %v1277 = vshrl.u32 %v1276, 7
        %v1278 = vsub.s32 %v943, %v1277
        %v1279 = vrot.slane %v1219, %v1278
        %v1280 = vlaneseq
        %v1281 = vshrl.u32 %v1280, 7
        %v1282 = vsub.s32 %v943, %v1281
        %v1283 = vrot.slane %v1222, %v1282
        %v1284 = vlaneseq
        %v1285 = vshrl.u32 %v1284, 7
        %v1286 = vsub.s32 %v943, %v1285
        %v1287 = vrot.slane %v1225, %v1286
        %v1288 = vlaneseq
        %v1289 = vshrl.u32 %v1288, 7
        %v1290 = vsub.s32 %v943, %v1289
        %v1291 = vrot.slane %v1228, %v1290
        %v1292 = vlaneseq
        %v1293 = vshrl.u32 %v1292, 7
        %v1294 = vsub.s32 %v943, %v1293
        %v1295 = vrot.slane %v1231, %v1294
        %v1296 = vsel %vm1008, %v1239, %v1235
        %v1297 = vsel %vm1010, %v1243, %v1296
        %v1298 = vsel %vm1012, %v1247, %v1297
        %v1299 = vsel %vm1014, %v1251, %v1298
        %v1300 = vsel %vm1016, %v1255, %v1299
        %v1301 = vsel %vm1018, %v1259, %v1300
        %v1302 = vsel %vm1020, %v1263, %v1301
        %v1303 = vsel %vm1008, %v1271, %v1267
        %v1304 = vsel %vm1010, %v1275, %v1303
        %v1305 = vsel %vm1012, %v1279, %v1304
        %v1306 = vsel %vm1014, %v1283, %v1305
        %v1307 = vsel %vm1016, %v1287, %v1306
        %v1308 = vsel %vm1018, %v1291, %v1307
        %v1309 = vsel %vm1020, %v1295, %v1308
        %v1312 = vsel %vm1031, %v1302, 0.0
        %1313 = vadd.xlane.f32.xlu0 %v1312
        %v1314 = vpop.xlane.xlu0 %1313
        %v1315 = vsel %vm1031, %v1309, 0.0
        %1316 = vadd.xlane.f32.xlu0 %v1315
        %v1317 = vpop.xlane.xlu0 %1316
        %v1320 = vlaneseq
        %v1321 = vshrl.u32 %v1320, 7
        %v1322 = vsub.s32 0, %v1321
        %v1323 = vrot.slane %v1314, %v1322
        %v1324 = vlaneseq
        %v1325 = vshrl.u32 %v1324, 7
        %v1326 = vsub.s32 1, %v1325
        %v1327 = vrot.slane %v1314, %v1326
        %v1328 = vlaneseq
        %v1329 = vshrl.u32 %v1328, 7
        %v1330 = vsub.s32 2, %v1329
        %v1331 = vrot.slane %v1314, %v1330
        %v1332 = vlaneseq
        %v1333 = vshrl.u32 %v1332, 7
        %v1334 = vsub.s32 3, %v1333
        %v1335 = vrot.slane %v1314, %v1334
        %v1336 = vlaneseq
        %v1337 = vshrl.u32 %v1336, 7
        %v1338 = vsub.s32 4, %v1337
        %v1339 = vrot.slane %v1314, %v1338
        %v1340 = vlaneseq
        %v1341 = vshrl.u32 %v1340, 7
        %v1342 = vsub.s32 5, %v1341
        %v1343 = vrot.slane %v1314, %v1342
        %v1344 = vlaneseq
        %v1345 = vshrl.u32 %v1344, 7
        %v1346 = vsub.s32 6, %v1345
        %v1347 = vrot.slane %v1314, %v1346
        %v1348 = vlaneseq
        %v1349 = vshrl.u32 %v1348, 7
        %v1350 = vsub.s32 7, %v1349
        %v1351 = vrot.slane %v1314, %v1350
        %v1352 = vlaneseq
        %v1353 = vshrl.u32 %v1352, 7
        %v1354 = vsub.s32 0, %v1353
        %v1355 = vrot.slane %v1317, %v1354
        %v1356 = vlaneseq
        %v1357 = vshrl.u32 %v1356, 7
        %v1358 = vsub.s32 1, %v1357
        %v1359 = vrot.slane %v1317, %v1358
        %v1360 = vlaneseq
        %v1361 = vshrl.u32 %v1360, 7
        %v1362 = vsub.s32 2, %v1361
        %v1363 = vrot.slane %v1317, %v1362
        %v1364 = vlaneseq
        %v1365 = vshrl.u32 %v1364, 7
        %v1366 = vsub.s32 3, %v1365
        %v1367 = vrot.slane %v1317, %v1366
        %v1368 = vlaneseq
        %v1369 = vshrl.u32 %v1368, 7
        %v1370 = vsub.s32 4, %v1369
        %v1371 = vrot.slane %v1317, %v1370
        %v1372 = vlaneseq
        %v1373 = vshrl.u32 %v1372, 7
        %v1374 = vsub.s32 5, %v1373
        %v1375 = vrot.slane %v1317, %v1374
        %v1376 = vlaneseq
        %v1377 = vshrl.u32 %v1376, 7
        %v1378 = vsub.s32 6, %v1377
        %v1379 = vrot.slane %v1317, %v1378
        %v1380 = vlaneseq
        %v1381 = vshrl.u32 %v1380, 7
        %v1382 = vsub.s32 7, %v1381
        %v1383 = vrot.slane %v1317, %v1382
        %v1400 = vrcp.pop %v1323
        %v1401 = vmul.f32 %v1137, %v1400
        %v1402 = vrcp.pop %v1327
        %v1403 = vmul.f32 %v1139, %v1402
        %v1404 = vrcp.pop %v1331
        %v1405 = vmul.f32 %v1141, %v1404
        %v1406 = vrcp.pop %v1335
        %v1407 = vmul.f32 %v1143, %v1406
        %v1408 = vrcp.pop %v1339
        %v1409 = vmul.f32 %v1145, %v1408
        %v1410 = vrcp.pop %v1343
        %v1411 = vmul.f32 %v1147, %v1410
        %v1412 = vrcp.pop %v1347
        %v1413 = vmul.f32 %v1149, %v1412
        %v1414 = vrcp.pop %v1351
        %v1415 = vmul.f32 %v1151, %v1414
        %v1416 = vrcp.pop %v1355
        %v1417 = vmul.f32 %v1153, %v1416
        %v1418 = vrcp.pop %v1359
        %v1419 = vmul.f32 %v1155, %v1418
        %v1420 = vrcp.pop %v1363
        %v1421 = vmul.f32 %v1157, %v1420
        %v1422 = vrcp.pop %v1367
        %v1423 = vmul.f32 %v1159, %v1422
        %v1424 = vrcp.pop %v1371
        %v1425 = vmul.f32 %v1161, %v1424
        %v1426 = vrcp.pop %v1375
        %v1427 = vmul.f32 %v1163, %v1426
        %v1428 = vrcp.pop %v1379
        %v1429 = vmul.f32 %v1165, %v1428
        %v1430 = vrcp.pop %v1383
        %v1431 = vmul.f32 %v1167, %v1430
        %1433 = vset.pattern.permute.xlu0 0
        %1434 = vperm.xlu0 %1433, %v1401
        %v1435 = vpop.permute.xlu0 %1434
        %1438 = vset.pattern.permute.xlu0 0
        %1439 = vperm.xlu0 %1438, %v1403
        %v1440 = vpop.permute.xlu0 %1439
        %1443 = vset.pattern.permute.xlu0 0
        %1444 = vperm.xlu0 %1443, %v1405
        %v1445 = vpop.permute.xlu0 %1444
        %1448 = vset.pattern.permute.xlu0 0
        %1449 = vperm.xlu0 %1448, %v1407
        %v1450 = vpop.permute.xlu0 %1449
        %1453 = vset.pattern.permute.xlu0 0
        %1454 = vperm.xlu0 %1453, %v1409
        %v1455 = vpop.permute.xlu0 %1454
        %1458 = vset.pattern.permute.xlu0 0
        %1459 = vperm.xlu0 %1458, %v1411
        %v1460 = vpop.permute.xlu0 %1459
        %1463 = vset.pattern.permute.xlu0 0
        %1464 = vperm.xlu0 %1463, %v1413
        %v1465 = vpop.permute.xlu0 %1464
        %1468 = vset.pattern.permute.xlu0 0
        %1469 = vperm.xlu0 %1468, %v1415
        %v1470 = vpop.permute.xlu0 %1469
        %1473 = vset.pattern.permute.xlu0 0
        %1474 = vperm.xlu0 %1473, %v1417
        %v1475 = vpop.permute.xlu0 %1474
        %1478 = vset.pattern.permute.xlu0 0
        %1479 = vperm.xlu0 %1478, %v1419
        %v1480 = vpop.permute.xlu0 %1479
        %1483 = vset.pattern.permute.xlu0 0
        %1484 = vperm.xlu0 %1483, %v1421
        %v1485 = vpop.permute.xlu0 %1484
        %1488 = vset.pattern.permute.xlu0 0
        %1489 = vperm.xlu0 %1488, %v1423
        %v1490 = vpop.permute.xlu0 %1489
        %1493 = vset.pattern.permute.xlu0 0
        %1494 = vperm.xlu0 %1493, %v1425
        %v1495 = vpop.permute.xlu0 %1494
        %1498 = vset.pattern.permute.xlu0 0
        %1499 = vperm.xlu0 %1498, %v1427
        %v1500 = vpop.permute.xlu0 %1499
        %1503 = vset.pattern.permute.xlu0 0
        %1504 = vperm.xlu0 %1503, %v1429
        %v1505 = vpop.permute.xlu0 %1504
        %1508 = vset.pattern.permute.xlu0 0
        %1509 = vperm.xlu0 %1508, %v1431
        %v1510 = vpop.permute.xlu0 %1509
        %v1512 = vmul.f32 %v1435, %v332
        %v1513 = vmul.f32 %v1440, %v333
        %v1514 = vmul.f32 %v1445, %v334
        %v1515 = vmul.f32 %v1450, %v335
        %v1516 = vmul.f32 %v1455, %v336
        %v1517 = vmul.f32 %v1460, %v337
        %v1518 = vmul.f32 %v1465, %v338
        %v1519 = vmul.f32 %v1470, %v339
        %v1520 = vmul.f32 %v1475, %v340
        %v1521 = vmul.f32 %v1480, %v341
        %v1522 = vmul.f32 %v1485, %v342
        %v1523 = vmul.f32 %v1490, %v343
        %v1524 = vmul.f32 %v1495, %v344
        %v1525 = vmul.f32 %v1500, %v345
        %v1526 = vmul.f32 %v1505, %v346
        %v1527 = vmul.f32 %v1510, %v347
        %v1528 = vsel %vm449, %v1512, 0.0
        %v1529 = vrot.slane %v1528, 4
        %v1530 = vadd.f32 %v1528, %v1529
        %v1531 = vrot.slane %v1530, 2
        %v1532 = vadd.f32 %v1530, %v1531
        %v1533 = vrot.slane %v1532, 1
        %v1534 = vadd.f32 %v1532, %v1533
        %v1535 = vsel %vm449, %v1513, 0.0
        %v1536 = vrot.slane %v1535, 4
        %v1537 = vadd.f32 %v1535, %v1536
        %v1538 = vrot.slane %v1537, 2
        %v1539 = vadd.f32 %v1537, %v1538
        %v1540 = vrot.slane %v1539, 1
        %v1541 = vadd.f32 %v1539, %v1540
        %v1542 = vsel %vm449, %v1514, 0.0
        %v1543 = vrot.slane %v1542, 4
        %v1544 = vadd.f32 %v1542, %v1543
        %v1545 = vrot.slane %v1544, 2
        %v1546 = vadd.f32 %v1544, %v1545
        %v1547 = vrot.slane %v1546, 1
        %v1548 = vadd.f32 %v1546, %v1547
        %v1549 = vsel %vm449, %v1515, 0.0
        %v1550 = vrot.slane %v1549, 4
        %v1551 = vadd.f32 %v1549, %v1550
        %v1552 = vrot.slane %v1551, 2
        %v1553 = vadd.f32 %v1551, %v1552
        %v1554 = vrot.slane %v1553, 1
        %v1555 = vadd.f32 %v1553, %v1554
        %v1556 = vsel %vm449, %v1516, 0.0
        %v1557 = vrot.slane %v1556, 4
        %v1558 = vadd.f32 %v1556, %v1557
        %v1559 = vrot.slane %v1558, 2
        %v1560 = vadd.f32 %v1558, %v1559
        %v1561 = vrot.slane %v1560, 1
        %v1562 = vadd.f32 %v1560, %v1561
        %v1563 = vsel %vm449, %v1517, 0.0
        %v1564 = vrot.slane %v1563, 4
        %v1565 = vadd.f32 %v1563, %v1564
        %v1566 = vrot.slane %v1565, 2
        %v1567 = vadd.f32 %v1565, %v1566
        %v1568 = vrot.slane %v1567, 1
        %v1569 = vadd.f32 %v1567, %v1568
        %v1570 = vsel %vm449, %v1518, 0.0
        %v1571 = vrot.slane %v1570, 4
        %v1572 = vadd.f32 %v1570, %v1571
        %v1573 = vrot.slane %v1572, 2
        %v1574 = vadd.f32 %v1572, %v1573
        %v1575 = vrot.slane %v1574, 1
        %v1576 = vadd.f32 %v1574, %v1575
        %v1577 = vsel %vm449, %v1519, 0.0
        %v1578 = vrot.slane %v1577, 4
        %v1579 = vadd.f32 %v1577, %v1578
        %v1580 = vrot.slane %v1579, 2
        %v1581 = vadd.f32 %v1579, %v1580
        %v1582 = vrot.slane %v1581, 1
        %v1583 = vadd.f32 %v1581, %v1582
        %v1584 = vsel %vm449, %v1520, 0.0
        %v1585 = vrot.slane %v1584, 4
        %v1586 = vadd.f32 %v1584, %v1585
        %v1587 = vrot.slane %v1586, 2
        %v1588 = vadd.f32 %v1586, %v1587
        %v1589 = vrot.slane %v1588, 1
        %v1590 = vadd.f32 %v1588, %v1589
        %v1591 = vsel %vm449, %v1521, 0.0
        %v1592 = vrot.slane %v1591, 4
        %v1593 = vadd.f32 %v1591, %v1592
        %v1594 = vrot.slane %v1593, 2
        %v1595 = vadd.f32 %v1593, %v1594
        %v1596 = vrot.slane %v1595, 1
        %v1597 = vadd.f32 %v1595, %v1596
        %v1598 = vsel %vm449, %v1522, 0.0
        %v1599 = vrot.slane %v1598, 4
        %v1600 = vadd.f32 %v1598, %v1599
        %v1601 = vrot.slane %v1600, 2
        %v1602 = vadd.f32 %v1600, %v1601
        %v1603 = vrot.slane %v1602, 1
        %v1604 = vadd.f32 %v1602, %v1603
        %v1605 = vsel %vm449, %v1523, 0.0
        %v1606 = vrot.slane %v1605, 4
        %v1607 = vadd.f32 %v1605, %v1606
        %v1608 = vrot.slane %v1607, 2
        %v1609 = vadd.f32 %v1607, %v1608
        %v1610 = vrot.slane %v1609, 1
        %v1611 = vadd.f32 %v1609, %v1610
        %v1612 = vsel %vm449, %v1524, 0.0
        %v1613 = vrot.slane %v1612, 4
        %v1614 = vadd.f32 %v1612, %v1613
        %v1615 = vrot.slane %v1614, 2
        %v1616 = vadd.f32 %v1614, %v1615
        %v1617 = vrot.slane %v1616, 1
        %v1618 = vadd.f32 %v1616, %v1617
        %v1619 = vsel %vm449, %v1525, 0.0
        %v1620 = vrot.slane %v1619, 4
        %v1621 = vadd.f32 %v1619, %v1620
        %v1622 = vrot.slane %v1621, 2
        %v1623 = vadd.f32 %v1621, %v1622
        %v1624 = vrot.slane %v1623, 1
        %v1625 = vadd.f32 %v1623, %v1624
        %v1626 = vsel %vm449, %v1526, 0.0
        %v1627 = vrot.slane %v1626, 4
        %v1628 = vadd.f32 %v1626, %v1627
        %v1629 = vrot.slane %v1628, 2
        %v1630 = vadd.f32 %v1628, %v1629
        %v1631 = vrot.slane %v1630, 1
        %v1632 = vadd.f32 %v1630, %v1631
        %v1633 = vsel %vm449, %v1527, 0.0
        %v1634 = vrot.slane %v1633, 4
        %v1635 = vadd.f32 %v1633, %v1634
        %v1636 = vrot.slane %v1635, 2
        %v1637 = vadd.f32 %v1635, %v1636
        %v1638 = vrot.slane %v1637, 1
        %v1639 = vadd.f32 %v1637, %v1638
        %v1656 = vsel %vm1008, %v1541, %v1534
        %v1657 = vsel %vm1010, %v1548, %v1656
        %v1658 = vsel %vm1012, %v1555, %v1657
        %v1659 = vsel %vm1014, %v1562, %v1658
        %v1660 = vsel %vm1016, %v1569, %v1659
        %v1661 = vsel %vm1018, %v1576, %v1660
        %v1662 = vsel %vm1020, %v1583, %v1661
        %v1663 = vsel %vm1008, %v1597, %v1590
        %v1664 = vsel %vm1010, %v1604, %v1663
        %v1665 = vsel %vm1012, %v1611, %v1664
        %v1666 = vsel %vm1014, %v1618, %v1665
        %v1667 = vsel %vm1016, %v1625, %v1666
        %v1668 = vsel %vm1018, %v1632, %v1667
        %v1669 = vsel %vm1020, %v1639, %v1668
        %1672 = vst.msk [vmem:[%s313] sm:$0xff] %vm449, %v1662
        %1673 = vst.msk [vmem:[%s313 + $0x8] sm:$0xff] %vm449, %v1669
        %v1674 = vlaneseq
        %v1675 = vshrl.u32 %v1674, 7
        %v1676 = vsub.s32 %v943, %v1675
        %v1677 = vrot.slane %v1435, %v1676
        %v1678 = vadd.s32 %v943, 4294967288
        %v1679 = vlaneseq
        %v1680 = vshrl.u32 %v1679, 7
        %v1681 = vsub.s32 %v1678, %v1680
        %v1682 = vrot.slane %v1440, %v1681
        %vm1683 = vcmask 130112
        %v1684 = vsel %vm1683, %v1682, %v1677
        %v1685 = vadd.s32 %v943, 4294967280
        %v1686 = vlaneseq
        %v1687 = vshrl.u32 %v1686, 7
        %v1688 = vsub.s32 %v1685, %v1687
        %v1689 = vrot.slane %v1445, %v1688
        %vm1690 = vcmask 195712
        %v1691 = vsel %vm1690, %v1689, %v1684
        %v1692 = vadd.s32 %v943, 4294967272
        %v1693 = vlaneseq
        %v1694 = vshrl.u32 %v1693, 7
        %v1695 = vsub.s32 %v1692, %v1694
        %v1696 = vrot.slane %v1450, %v1695
        %vm1697 = vcmask 261312
        %v1698 = vsel %vm1697, %v1696, %v1691
        %v1699 = vadd.s32 %v943, 4294967264
        %v1700 = vlaneseq
        %v1701 = vshrl.u32 %v1700, 7
        %v1702 = vsub.s32 %v1699, %v1701
        %v1703 = vrot.slane %v1455, %v1702
        %vm1704 = vcmask 326912
        %v1705 = vsel %vm1704, %v1703, %v1698
        %v1706 = vadd.s32 %v943, 4294967256
        %v1707 = vlaneseq
        %v1708 = vshrl.u32 %v1707, 7
        %v1709 = vsub.s32 %v1706, %v1708
        %v1710 = vrot.slane %v1460, %v1709
        %vm1711 = vcmask 392512
        %v1712 = vsel %vm1711, %v1710, %v1705
        %v1713 = vadd.s32 %v943, 4294967248
        %v1714 = vlaneseq
        %v1715 = vshrl.u32 %v1714, 7
        %v1716 = vsub.s32 %v1713, %v1715
        %v1717 = vrot.slane %v1465, %v1716
        %vm1718 = vcmask 458112
        %v1719 = vsel %vm1718, %v1717, %v1712
        %v1720 = vadd.s32 %v943, 4294967240
        %v1721 = vlaneseq
        %v1722 = vshrl.u32 %v1721, 7
        %v1723 = vsub.s32 %v1720, %v1722
        %v1724 = vrot.slane %v1470, %v1723
        %vm1725 = vcmask 523712
        %v1726 = vsel %vm1725, %v1724, %v1719
        %v1727 = vadd.s32 %v943, 4294967232
        %v1728 = vlaneseq
        %v1729 = vshrl.u32 %v1728, 7
        %v1730 = vsub.s32 %v1727, %v1729
        %v1731 = vrot.slane %v1475, %v1730
        %vm1732 = vcmask 589312
        %v1733 = vsel %vm1732, %v1731, %v1726
        %v1734 = vadd.s32 %v943, 4294967224
        %v1735 = vlaneseq
        %v1736 = vshrl.u32 %v1735, 7
        %v1737 = vsub.s32 %v1734, %v1736
        %v1738 = vrot.slane %v1480, %v1737
        %vm1739 = vcmask 654912
        %v1740 = vsel %vm1739, %v1738, %v1733
        %v1741 = vadd.s32 %v943, 4294967216
        %v1742 = vlaneseq
        %v1743 = vshrl.u32 %v1742, 7
        %v1744 = vsub.s32 %v1741, %v1743
        %v1745 = vrot.slane %v1485, %v1744
        %vm1746 = vcmask 720512
        %v1747 = vsel %vm1746, %v1745, %v1740
        %v1748 = vadd.s32 %v943, 4294967208
        %v1749 = vlaneseq
        %v1750 = vshrl.u32 %v1749, 7
        %v1751 = vsub.s32 %v1748, %v1750
        %v1752 = vrot.slane %v1490, %v1751
        %vm1753 = vcmask 786112
        %v1754 = vsel %vm1753, %v1752, %v1747
        %v1755 = vadd.s32 %v943, 4294967200
        %v1756 = vlaneseq
        %v1757 = vshrl.u32 %v1756, 7
        %v1758 = vsub.s32 %v1755, %v1757
        %v1759 = vrot.slane %v1495, %v1758
        %vm1760 = vcmask 851712
        %v1761 = vsel %vm1760, %v1759, %v1754
        %v1762 = vadd.s32 %v943, 4294967192
        %v1763 = vlaneseq
        %v1764 = vshrl.u32 %v1763, 7
        %v1765 = vsub.s32 %v1762, %v1764
        %v1766 = vrot.slane %v1500, %v1765
        %vm1767 = vcmask 917312
        %v1768 = vsel %vm1767, %v1766, %v1761
        %v1769 = vadd.s32 %v943, 4294967184
        %v1770 = vlaneseq
        %v1771 = vshrl.u32 %v1770, 7
        %v1772 = vsub.s32 %v1769, %v1771
        %v1773 = vrot.slane %v1505, %v1772
        %vm1774 = vcmask 982912
        %v1775 = vsel %vm1774, %v1773, %v1768
        %v1776 = vadd.s32 %v943, 4294967176
        %v1777 = vlaneseq
        %v1778 = vshrl.u32 %v1777, 7
        %v1779 = vsub.s32 %v1776, %v1778
        %v1780 = vrot.slane %v1510, %v1779
        %vm1781 = vcmask 1048512
        %v1782 = vsel %vm1781, %v1780, %v1775
        %1784 = vst [vmem:[%s329] sm:$0x1] %v1782
        %s1785 = sand.u32 %s169, 1
        %s1786 = scalar_lea.sflag [#allocation4], %s1785
        %s1787 = sand.u32 %s169, 1
        %s1788 = smul.addr %s1787, 16
        %s1789 = scalar_lea.vmem [#allocation5], %s1788
        %p1790 = scmp.lt.s32.totalorder %s25, 1
        %s1791 = scalar_select %p1790, %s25, 1
        %s1792 = scalar_lea.vmem %s7, %s1791
        // Predicated region
        $region49: #{current_historical_attention_batched.1} parent=43 // pred_check
          %p1793 = pneg %p179
        $region50: #{current_historical_attention_batched.1} parent=43 // pred_check_branch
          %1795 = sbr.rel (%p1793) target = $region52
        $region51: #{current_historical_attention_batched.1} parent=43 // pred_region
          %s1796 = smul.u32 2, %s25
          %s1798 = ssub.s32 256, 256
          %1799 = vsyncadd %s1786, %s1798
          %s1800 = smul.addr %s1796, 128
          %s1801 = scalar_lea.hbm %s6, %s1800
          %s1802 = sshll.u32 %s1789, 4
          %s1803 = int_to_ptr.vmem [resolvable:$true] %s1802
          %1808 = dma.vmem_to_hbm [thread:$0]  %s1803, 256, %s1801, %s1786, 128, 128, 8
        $region52: #{current_historical_attention_batched.1} parent=43 // pred_fallthru
          _
        // Predicated region
        $region53: #{current_historical_attention_batched.1} parent=43 // pred_check
          %p1809 = pneg %p205
        $region54: #{current_historical_attention_batched.1} parent=43 // pred_check_branch
          %1811 = sbr.rel (%p1809) target = $region56
        $region55: #{current_historical_attention_batched.1} parent=43 // pred_region
          _
        $region56: #{current_historical_attention_batched.1} parent=43 // pred_fallthru
          _
      $region44: #{current_historical_attention_batched.1} parent=5 // pred_fallthru
        _
      %p1812 = scmp.le.s32.totalorder 2, %s20
      // Predicated region
      $region57: #{current_historical_attention_batched.1} parent=5 // pred_check
        %p1813 = pneg %p1812
      $region58: #{current_historical_attention_batched.1} parent=5 // pred_check_branch
        %1815 = sbr.rel (%p1813) target = $region60
      $region59: #{current_historical_attention_batched.1} parent=5 // pred_region
        %s1816 = ssub.s32 %s20, 2
        // Predicated region
        $region61: #{current_historical_attention_batched.1} parent=59 // pred_check
          %p1817 = pneg %p185
        $region62: #{current_historical_attention_batched.1} parent=59 // pred_check_branch
          %1819 = sbr.rel (%p1817) target = $region64
        $region63: #{current_historical_attention_batched.1} parent=59 // pred_region
          %s1820 = sand.u32 %s170, 1
          %s1821 = scalar_lea.sflag [#allocation4], %s1820
          %s1822 = sand.u32 %s170, 1
          %s1823 = smul.addr %s1822, 16
          %s1824 = scalar_lea.vmem [#allocation5], %s1823
          %1825 = dma.done %s1821, 256
        $region64: #{current_historical_attention_batched.1} parent=59 // pred_fallthru
          _
        // Predicated region
        $region65: #{current_historical_attention_batched.1} parent=59 // pred_check
          %p1826 = pneg %p211
        $region66: #{current_historical_attention_batched.1} parent=59 // pred_check_branch
          %1828 = sbr.rel (%p1826) target = $region68
        $region67: #{current_historical_attention_batched.1} parent=59 // pred_region
          %p1829 = scmp.lt.s32.totalorder %s26, 1
          %s1830 = scalar_select %p1829, %s26, 1
          %s1831 = scalar_lea.vmem %s7, %s1830
        $region68: #{current_historical_attention_batched.1} parent=59 // pred_fallthru
          _
      $region60: #{current_historical_attention_batched.1} parent=5 // pred_fallthru
        _
    $region6: #{current_historical_attention_batched.1} parent=1 // loop_footer
      %s24 = sadd.s32 1, %s20
    $region7: #{current_historical_attention_batched.1} parent=1 // loop_footer_branch
      %19 = sbr.rel target = $region3
    $region8: #{current_historical_attention_batched.1} parent=1 // loop_exit
      _
    %1832 = vsyncpa [#allocation3], 1
    %s1833 = scalar_lea.sflag [#allocation3], 1
    %1834 = vsyncpa %s1833, 1
    %1835 = vsyncpa [#allocation4], 1
    %s1836 = scalar_lea.sflag [#allocation4], 1
    %1837 = vsyncpa %s1836, 1

</llo_original>
